<compile_context>
chip_gen: v7x
topology: tpu7x:2x2x1
jax: 0.10.0
libtpu: 0.0.40
codegen_flags: <defaults>
</compile_context>

<pallas_src>
import jax
import jax.numpy as jnp
from jax.experimental import pallas as pl
from jax.experimental.pallas import tpu as pltpu

# Sub-pixel decomposition of ConvTranspose2d(k=4, s=2, p=1):
#   output index o = 2*i - 1 + k  =>  for each output parity the two contributing
#   (kernel tap k, padded-input offset) pairs are:
#     parity 0 (even o): (k=3, off=0), (k=1, off=1)
#     parity 1 (odd  o): (k=2, off=1), (k=0, off=2)
_PAR_TAPS = (((3, 0), (1, 1)), ((2, 1), (0, 2)))   # ((kernel tap, padded offset), ...) per parity
_PAR_OFFS = ((0, 1), (1, 2))                        # padded offsets only, per parity


def _unet_up_kernel(xp_ref, w_ref, skip_ref, out_ref, patch_ref, acc_ref):
    """One batch element per grid step.

    xp_ref   : (1, H+2, W+2, Cin)    zero-padded input
    w_ref    : (4, 4*Cin, Cout)      per-parity weights, taps concatenated along K
    skip_ref : (1, H, 2, W, 2*Cskip) skip tensor (zero-copy reshape of (2H, 2W, Cskip))
    out_ref  : (1, H, 2, W, 2*Ctot)  result (zero-copy reshape of (2H, 2W, Ctot))
    patch_ref: (H*W, 4*Cin)          lane-contiguous per-parity im2col patch
    acc_ref  : (H*W, 4*Cout) f32     lane-dense conv accumulator (parity on lanes)
    """
    H = out_ref.shape[1]
    W = out_ref.shape[3]
    Cin = xp_ref.shape[3]
    Cout = w_ref.shape[2]
    Ctot = out_ref.shape[4] // 2
    Cskip = Ctot - Cout
    HW = H * W

    s1 = jnp.zeros((1, Cout), jnp.float32)     # per-channel sum
    s2 = jnp.zeros((1, Cout), jnp.float32)     # per-channel sum of squares

    # --- transposed conv as 4 sub-pixel convolutions, one deep-K matmul each ---
    for py in range(2):
        for px in range(2):
            k = py * 2 + px
            offs_y = _PAR_OFFS[py]
            offs_x = _PAR_OFFS[px]
            # pack the 4 shifted (H, W, Cin) slabs into (HW, 4*Cin); channels stay on
            # the lane axis so the spatial shift is layout-cheap, and the (HW, Cin)
            # reshape is layout-trivial when W is a multiple of the 8-row sublane tile.
            for t in range(2):
                for s in range(2):
                    oy = offs_y[t]
                    ox = offs_x[s]
                    blk = t * 2 + s
                    patch_ref[:, blk * Cin:(blk + 1) * Cin] = (
                        xp_ref[0, oy:oy + H, ox:ox + W, :].reshape(HW, Cin))
            # one MXU matmul per parity: contraction depth 4*Cin
            y = jnp.dot(patch_ref[...], w_ref[k],
                        preferred_element_type=jnp.float32)        # (HW, Cout)
            # lane-slice write into the single lane-dense accumulator
            acc_ref[:, k * Cout:(k + 1) * Cout] = y
            # single-pass InstanceNorm statistics, folded into the conv loop
            s1 = s1 + jnp.sum(y, axis=0, keepdims=True)
            s2 = s2 + jnp.sum(y * y, axis=0, keepdims=True)

    # --- InstanceNorm2d (affine=False, biased variance, eps=1e-5) over (2H)*(2W) ---
    inv_n = 1.0 / (4.0 * HW)
    mean = s1 * inv_n
    var = s2 * inv_n - mean * mean
    rstd = jax.lax.rsqrt(var + 1e-5)

    # --- normalize + LeakyReLU(0.01); store directly parity-interleaved ---
    # out_ref[0, a, py, b, px*Ctot + c]  ==  result[2a+py, 2b+px, c]  (free reshape outside)
    for py in range(2):
        for px in range(2):
            k = py * 2 + px
            yn = (acc_ref[:, k * Cout:(k + 1) * Cout] - mean) * rstd
            yn = jnp.where(yn >= 0, yn, 0.01 * yn)
            out_ref[0, :, py, :, px * Ctot:px * Ctot + Cout] = (
                yn.reshape(H, W, Cout).astype(out_ref.dtype))

    # --- fused torch.cat((x, skip), channel dim): copy skip into tail channels ---
    for px in range(2):
        out_ref[0, :, :, :, px * Ctot + Cout:(px + 1) * Ctot] = (
            skip_ref[0, :, :, :, px * Cskip:(px + 1) * Cskip].astype(out_ref.dtype))


def unet_up(x_nhwc, skip_nhwc, w):
    """UNetUp forward (dropout=0.0), all tensors NHWC.

    x_nhwc   : (N, H, W, Cin)
    skip_nhwc: (N, 2H, 2W, Cskip)
    w        : (Cin, Cout, 4, 4)   -- PyTorch ConvTranspose2d weight layout
    returns  : (N, 2H, 2W, Cout + Cskip)
    """
    N, H, W, Cin = x_nhwc.shape
    Cout = w.shape[1]
    Ns, H2, W2, Cskip = skip_nhwc.shape
    assert Ns == N and H2 == 2 * H and W2 == 2 * W
    Ctot = Cout + Cskip

    # zero padding implied by ConvTranspose2d(k=4, s=2, p=1)
    xp = jnp.pad(x_nhwc, ((0, 0), (1, 1), (1, 1), (0, 0)))

    # per-parity deep-K weights: Wm[py*2+px] = concat_k-dim over (t, s) of w[:, :, ky_t, kx_s]
    mats = []
    for py in range(2):
        for px in range(2):
            blocks = [w[:, :, ky, kx]
                      for (ky, _) in _PAR_TAPS[py]
                      for (kx, _) in _PAR_TAPS[px]]          # order t*2+s, matches kernel
            mats.append(jnp.concatenate(blocks, axis=0))     # (4*Cin, Cout)
    Wm = jnp.stack(mats, axis=0)                             # (4, 4*Cin, Cout)

    # Zero-copy relayout: (N, 2H, 2W, C) and (N, H, 2, W, 2*C) are the same row-major buffer.
    skip_f = skip_nhwc.reshape(N, H, 2, W, 2 * Cskip)

    out = pl.pallas_call(
        _unet_up_kernel,
        out_shape=jax.ShapeDtypeStruct((N, H, 2, W, 2 * Ctot), x_nhwc.dtype),
        grid=(N,),
        in_specs=[
            pl.BlockSpec((1, H + 2, W + 2, Cin), lambda n: (n, 0, 0, 0)),
            pl.BlockSpec((4, 4 * Cin, Cout), lambda n: (0, 0, 0)),
            pl.BlockSpec((1, H, 2, W, 2 * Cskip), lambda n: (n, 0, 0, 0, 0)),
        ],
        out_specs=pl.BlockSpec((1, H, 2, W, 2 * Ctot), lambda n: (n, 0, 0, 0, 0)),
        scratch_shapes=[
            pltpu.VMEM((H * W, 4 * Cin), x_nhwc.dtype),      # im2col patch
            pltpu.VMEM((H * W, 4 * Cout), jnp.float32),      # conv accumulator
        ],
        compiler_params=pltpu.CompilerParams(
            dimension_semantics=("parallel",),
            vmem_limit_bytes=48 * 1024 * 1024,   # headroom under 64 MiB (v7x) / 128 MiB
        ),
    )(xp, Wm, skip_f)

    # free (bit-identical) reshape: interleave + concat already done in-kernel
    return out.reshape(N, 2 * H, 2 * W, Ctot)


if __name__ == "__main__":
    key = jax.random.PRNGKey(0)
    kx, ks, kw = jax.random.split(key, 3)

    N, Cin, Cout, H, W = 2, 8, 4, 8, 8
    Cskip = Cout

    x = jax.random.normal(kx, (N, H, W, Cin), jnp.float32)               # NHWC
    skip = jax.random.normal(ks, (N, 2 * H, 2 * W, Cskip), jnp.float32)
    # ConvTranspose2d weight: (in_channels, out_channels, kH, kW), bias=False
    w = 0.1 * jax.random.normal(kw, (Cin, Cout, 4, 4), jnp.float32)

    out = jax.block_until_ready(unet_up(x, skip, w))
    assert out.shape == (N, 2 * H, 2 * W, Cout + Cskip)

    # ---- reference (plain JAX/XLA, NCHW like PyTorch) ----
    x_nchw = x.transpose(0, 3, 1, 2)
    w_flip = w[:, :, ::-1, ::-1]
    y_ref = jax.lax.conv_general_dilated(
        x_nchw, w_flip, window_strides=(1, 1), padding=[(2, 2), (2, 2)],
        lhs_dilation=(2, 2), dimension_numbers=('NCHW', 'IOHW', 'NCHW'))
    mean = y_ref.mean(axis=(2, 3), keepdims=True)
    var = ((y_ref - mean) ** 2).mean(axis=(2, 3), keepdims=True)
    y_ref = (y_ref - mean) * jax.lax.rsqrt(var + 1e-5)
    y_ref = jnp.where(y_ref >= 0, y_ref, 0.01 * y_ref)
    ref = jnp.concatenate([y_ref, skip.transpose(0, 3, 1, 2)], axis=1)
    ref_nhwc = ref.transpose(0, 2, 3, 1)

    err = float(jnp.max(jnp.abs(out - ref_nhwc)))
    assert err < 1e-4, f"max abs error {err}"
    print("KERNEL_OK")
</pallas_src>

<mosaic_0001>
module attributes {stable_mosaic.version = 11 : i64} {
  func.func @_unet_up_kernel(%arg0: i32, %arg1: memref<1x10x10x8xf32, #tpu.memory_space<vmem>>, %arg2: memref<4x32x4xf32, #tpu.memory_space<vmem>>, %arg3: memref<1x8x2x8x8xf32, #tpu.memory_space<vmem>>, %arg4: memref<1x8x2x8x16xf32, #tpu.memory_space<vmem>>, %arg5: memref<64x32xf32, #tpu.memory_space<vmem>>, %arg6: memref<64x16xf32, #tpu.memory_space<vmem>>) attributes {dimension_semantics = [#tpu.dimension_semantics<parallel>], iteration_bounds = array<i64: 2>, scalar_prefetch = 0 : i64, scratch_operands = 2 : i64, tpu.core_type = #tpu.core_type<tc>, window_params = [{transform_indices = @transform_0, window_bounds = array<i64: 1, 10, 10, 8>}, {pipeline_mode = #tpu.pipeline_mode<synchronous>, transform_indices = @transform_1, window_bounds = array<i64: 4, 32, 4>}, {transform_indices = @transform_2, window_bounds = array<i64: 1, 8, 2, 8, 8>}, {transform_indices = @transform_3, window_bounds = array<i64: 1, 8, 2, 8, 16>}]} {
    %cst = arith.constant 0.000000e+00 : f32
    %0 = vector.broadcast %cst : f32 to vector<1x4xf32>
    %cst_0 = arith.constant 0.000000e+00 : f32
    %1 = vector.broadcast %cst_0 : f32 to vector<1x4xf32>
    %c0 = arith.constant 0 : index
    %c0_1 = arith.constant 0 : index
    %c0_2 = arith.constant 0 : index
    %c0_3 = arith.constant 0 : index
    %2 = vector.load %arg1[%c0, %c0_1, %c0_2, %c0_3] : memref<1x10x10x8xf32, #tpu.memory_space<vmem>>, vector<1x8x8x8xf32>
    %3 = vector.shape_cast %2 : vector<1x8x8x8xf32> to vector<8x8x8xf32>
    %4 = vector.shape_cast %3 : vector<8x8x8xf32> to vector<64x8xf32>
    %c0_4 = arith.constant 0 : index
    %c0_5 = arith.constant 0 : index
    %5 = vector.load %arg5[%c0_4, %c0_5] : memref<64x32xf32, #tpu.memory_space<vmem>>, vector<64x8xf32>
    tpu.vector_store %arg5[%c0_4, %c0_5], %4 {strides = array<i32>} : memref<64x32xf32, #tpu.memory_space<vmem>>, vector<64x8xf32>,
    %c0_6 = arith.constant 0 : index
    %c0_7 = arith.constant 0 : index
    %c1 = arith.constant 1 : index
    %c0_8 = arith.constant 0 : index
    %6 = vector.load %arg1[%c0_6, %c0_7, %c1, %c0_8] : memref<1x10x10x8xf32, #tpu.memory_space<vmem>>, vector<1x8x8x8xf32>
    %7 = vector.shape_cast %6 : vector<1x8x8x8xf32> to vector<8x8x8xf32>
    %8 = vector.shape_cast %7 : vector<8x8x8xf32> to vector<64x8xf32>
    %c0_9 = arith.constant 0 : index
    %c8 = arith.constant 8 : index
    %9 = vector.load %arg5[%c0_9, %c8] : memref<64x32xf32, #tpu.memory_space<vmem>>, vector<64x8xf32>
    tpu.vector_store %arg5[%c0_9, %c8], %8 {strides = array<i32>} : memref<64x32xf32, #tpu.memory_space<vmem>>, vector<64x8xf32>,
    %c0_10 = arith.constant 0 : index
    %c1_11 = arith.constant 1 : index
    %c0_12 = arith.constant 0 : index
    %c0_13 = arith.constant 0 : index
    %10 = vector.load %arg1[%c0_10, %c1_11, %c0_12, %c0_13] : memref<1x10x10x8xf32, #tpu.memory_space<vmem>>, vector<1x8x8x8xf32>
    %11 = vector.shape_cast %10 : vector<1x8x8x8xf32> to vector<8x8x8xf32>
    %12 = vector.shape_cast %11 : vector<8x8x8xf32> to vector<64x8xf32>
    %c0_14 = arith.constant 0 : index
    %c16 = arith.constant 16 : index
    %13 = vector.load %arg5[%c0_14, %c16] : memref<64x32xf32, #tpu.memory_space<vmem>>, vector<64x8xf32>
    tpu.vector_store %arg5[%c0_14, %c16], %12 {strides = array<i32>} : memref<64x32xf32, #tpu.memory_space<vmem>>, vector<64x8xf32>,
    %c0_15 = arith.constant 0 : index
    %c1_16 = arith.constant 1 : index
    %c1_17 = arith.constant 1 : index
    %c0_18 = arith.constant 0 : index
    %14 = vector.load %arg1[%c0_15, %c1_16, %c1_17, %c0_18] : memref<1x10x10x8xf32, #tpu.memory_space<vmem>>, vector<1x8x8x8xf32>
    %15 = vector.shape_cast %14 : vector<1x8x8x8xf32> to vector<8x8x8xf32>
    %16 = vector.shape_cast %15 : vector<8x8x8xf32> to vector<64x8xf32>
    %c0_19 = arith.constant 0 : index
    %c24 = arith.constant 24 : index
    %17 = vector.load %arg5[%c0_19, %c24] : memref<64x32xf32, #tpu.memory_space<vmem>>, vector<64x8xf32>
    tpu.vector_store %arg5[%c0_19, %c24], %16 {strides = array<i32>} : memref<64x32xf32, #tpu.memory_space<vmem>>, vector<64x8xf32>,
    %c0_20 = arith.constant 0 : index
    %c0_21 = arith.constant 0 : index
    %18 = vector.load %arg5[%c0_20, %c0_21] : memref<64x32xf32, #tpu.memory_space<vmem>>, vector<64x32xf32>
    %c0_22 = arith.constant 0 : index
    %c0_23 = arith.constant 0 : index
    %c0_24 = arith.constant 0 : index
    %19 = vector.load %arg2[%c0_22, %c0_23, %c0_24] : memref<4x32x4xf32, #tpu.memory_space<vmem>>, vector<1x32x4xf32>
    %20 = vector.shape_cast %19 : vector<1x32x4xf32> to vector<32x4xf32>
    %cst_25 = arith.constant dense<0.000000e+00> : vector<64x4xf32>
    %21 = tpu.matmul %18, %20, %cst_25 {dimension_numbers = #tpu.dot_dimension_numbers<[1], [0], [0], [1], [0, 0, 1, 1], [], []>} : vector<64x32xf32>, vector<32x4xf32>, vector<64x4xf32> -> vector<64x4xf32>
    %c0_26 = arith.constant 0 : index
    %c0_27 = arith.constant 0 : index
    %22 = vector.load %arg6[%c0_26, %c0_27] : memref<64x16xf32, #tpu.memory_space<vmem>>, vector<64x4xf32>
    tpu.vector_store %arg6[%c0_26, %c0_27], %21 {strides = array<i32>} : memref<64x16xf32, #tpu.memory_space<vmem>>, vector<64x4xf32>,
    %cst_28 = arith.constant dense<0.000000e+00> : vector<4xf32>
    %23 = vector.multi_reduction <add>, %21, %cst_28 [0] : vector<64x4xf32> to vector<4xf32>
    %24 = vector.shape_cast %23 : vector<4xf32> to vector<1x4xf32>
    %25 = arith.addf %0, %24 : vector<1x4xf32>
    %26 = arith.mulf %21, %21 : vector<64x4xf32>
    %cst_29 = arith.constant dense<0.000000e+00> : vector<4xf32>
    %27 = vector.multi_reduction <add>, %26, %cst_29 [0] : vector<64x4xf32> to vector<4xf32>
    %28 = vector.shape_cast %27 : vector<4xf32> to vector<1x4xf32>
    %29 = arith.addf %1, %28 : vector<1x4xf32>
    %c0_30 = arith.constant 0 : index
    %c0_31 = arith.constant 0 : index
    %c1_32 = arith.constant 1 : index
    %c0_33 = arith.constant 0 : index
    %30 = vector.load %arg1[%c0_30, %c0_31, %c1_32, %c0_33] : memref<1x10x10x8xf32, #tpu.memory_space<vmem>>, vector<1x8x8x8xf32>
    %31 = vector.shape_cast %30 : vector<1x8x8x8xf32> to vector<8x8x8xf32>
    %32 = vector.shape_cast %31 : vector<8x8x8xf32> to vector<64x8xf32>
    %c0_34 = arith.constant 0 : index
    %c0_35 = arith.constant 0 : index
    %33 = vector.load %arg5[%c0_34, %c0_35] : memref<64x32xf32, #tpu.memory_space<vmem>>, vector<64x8xf32>
    tpu.vector_store %arg5[%c0_34, %c0_35], %32 {strides = array<i32>} : memref<64x32xf32, #tpu.memory_space<vmem>>, vector<64x8xf32>,
    %c0_36 = arith.constant 0 : index
    %c0_37 = arith.constant 0 : index
    %c2 = arith.constant 2 : index
    %c0_38 = arith.constant 0 : index
    %34 = vector.load %arg1[%c0_36, %c0_37, %c2, %c0_38] : memref<1x10x10x8xf32, #tpu.memory_space<vmem>>, vector<1x8x8x8xf32>
    %35 = vector.shape_cast %34 : vector<1x8x8x8xf32> to vector<8x8x8xf32>
    %36 = vector.shape_cast %35 : vector<8x8x8xf32> to vector<64x8xf32>
    %c0_39 = arith.constant 0 : index
    %c8_40 = arith.constant 8 : index
    %37 = vector.load %arg5[%c0_39, %c8_40] : memref<64x32xf32, #tpu.memory_space<vmem>>, vector<64x8xf32>
    tpu.vector_store %arg5[%c0_39, %c8_40], %36 {strides = array<i32>} : memref<64x32xf32, #tpu.memory_space<vmem>>, vector<64x8xf32>,
    %c0_41 = arith.constant 0 : index
    %c1_42 = arith.constant 1 : index
    %c1_43 = arith.constant 1 : index
    %c0_44 = arith.constant 0 : index
    %38 = vector.load %arg1[%c0_41, %c1_42, %c1_43, %c0_44] : memref<1x10x10x8xf32, #tpu.memory_space<vmem>>, vector<1x8x8x8xf32>
    %39 = vector.shape_cast %38 : vector<1x8x8x8xf32> to vector<8x8x8xf32>
    %40 = vector.shape_cast %39 : vector<8x8x8xf32> to vector<64x8xf32>
    %c0_45 = arith.constant 0 : index
    %c16_46 = arith.constant 16 : index
    %41 = vector.load %arg5[%c0_45, %c16_46] : memref<64x32xf32, #tpu.memory_space<vmem>>, vector<64x8xf32>
    tpu.vector_store %arg5[%c0_45, %c16_46], %40 {strides = array<i32>} : memref<64x32xf32, #tpu.memory_space<vmem>>, vector<64x8xf32>,
    %c0_47 = arith.constant 0 : index
    %c1_48 = arith.constant 1 : index
    %c2_49 = arith.constant 2 : index
    %c0_50 = arith.constant 0 : index
    %42 = vector.load %arg1[%c0_47, %c1_48, %c2_49, %c0_50] : memref<1x10x10x8xf32, #tpu.memory_space<vmem>>, vector<1x8x8x8xf32>
    %43 = vector.shape_cast %42 : vector<1x8x8x8xf32> to vector<8x8x8xf32>
    %44 = vector.shape_cast %43 : vector<8x8x8xf32> to vector<64x8xf32>
    %c0_51 = arith.constant 0 : index
    %c24_52 = arith.constant 24 : index
    %45 = vector.load %arg5[%c0_51, %c24_52] : memref<64x32xf32, #tpu.memory_space<vmem>>, vector<64x8xf32>
    tpu.vector_store %arg5[%c0_51, %c24_52], %44 {strides = array<i32>} : memref<64x32xf32, #tpu.memory_space<vmem>>, vector<64x8xf32>,
    %c0_53 = arith.constant 0 : index
    %c0_54 = arith.constant 0 : index
    %46 = vector.load %arg5[%c0_53, %c0_54] : memref<64x32xf32, #tpu.memory_space<vmem>>, vector<64x32xf32>
    %c1_55 = arith.constant 1 : index
    %c0_56 = arith.constant 0 : index
    %c0_57 = arith.constant 0 : index
    %47 = vector.load %arg2[%c1_55, %c0_56, %c0_57] : memref<4x32x4xf32, #tpu.memory_space<vmem>>, vector<1x32x4xf32>
    %48 = vector.shape_cast %47 : vector<1x32x4xf32> to vector<32x4xf32>
    %cst_58 = arith.constant dense<0.000000e+00> : vector<64x4xf32>
    %49 = tpu.matmul %46, %48, %cst_58 {dimension_numbers = #tpu.dot_dimension_numbers<[1], [0], [0], [1], [0, 0, 1, 1], [], []>} : vector<64x32xf32>, vector<32x4xf32>, vector<64x4xf32> -> vector<64x4xf32>
    %c0_59 = arith.constant 0 : index
    %c4 = arith.constant 4 : index
    %50 = vector.load %arg6[%c0_59, %c4] : memref<64x16xf32, #tpu.memory_space<vmem>>, vector<64x4xf32>
    tpu.vector_store %arg6[%c0_59, %c4], %49 {strides = array<i32>} : memref<64x16xf32, #tpu.memory_space<vmem>>, vector<64x4xf32>,
    %cst_60 = arith.constant dense<0.000000e+00> : vector<4xf32>
    %51 = vector.multi_reduction <add>, %49, %cst_60 [0] : vector<64x4xf32> to vector<4xf32>
    %52 = vector.shape_cast %51 : vector<4xf32> to vector<1x4xf32>
    %53 = arith.addf %25, %52 : vector<1x4xf32>
    %54 = arith.mulf %49, %49 : vector<64x4xf32>
    %cst_61 = arith.constant dense<0.000000e+00> : vector<4xf32>
    %55 = vector.multi_reduction <add>, %54, %cst_61 [0] : vector<64x4xf32> to vector<4xf32>
    %56 = vector.shape_cast %55 : vector<4xf32> to vector<1x4xf32>
    %57 = arith.addf %29, %56 : vector<1x4xf32>
    %c0_62 = arith.constant 0 : index
    %c1_63 = arith.constant 1 : index
    %c0_64 = arith.constant 0 : index
    %c0_65 = arith.constant 0 : index
    %58 = vector.load %arg1[%c0_62, %c1_63, %c0_64, %c0_65] : memref<1x10x10x8xf32, #tpu.memory_space<vmem>>, vector<1x8x8x8xf32>
    %59 = vector.shape_cast %58 : vector<1x8x8x8xf32> to vector<8x8x8xf32>
    %60 = vector.shape_cast %59 : vector<8x8x8xf32> to vector<64x8xf32>
    %c0_66 = arith.constant 0 : index
    %c0_67 = arith.constant 0 : index
    %61 = vector.load %arg5[%c0_66, %c0_67] : memref<64x32xf32, #tpu.memory_space<vmem>>, vector<64x8xf32>
    tpu.vector_store %arg5[%c0_66, %c0_67], %60 {strides = array<i32>} : memref<64x32xf32, #tpu.memory_space<vmem>>, vector<64x8xf32>,
    %c0_68 = arith.constant 0 : index
    %c1_69 = arith.constant 1 : index
    %c1_70 = arith.constant 1 : index
    %c0_71 = arith.constant 0 : index
    %62 = vector.load %arg1[%c0_68, %c1_69, %c1_70, %c0_71] : memref<1x10x10x8xf32, #tpu.memory_space<vmem>>, vector<1x8x8x8xf32>
    %63 = vector.shape_cast %62 : vector<1x8x8x8xf32> to vector<8x8x8xf32>
    %64 = vector.shape_cast %63 : vector<8x8x8xf32> to vector<64x8xf32>
    %c0_72 = arith.constant 0 : index
    %c8_73 = arith.constant 8 : index
    %65 = vector.load %arg5[%c0_72, %c8_73] : memref<64x32xf32, #tpu.memory_space<vmem>>, vector<64x8xf32>
    tpu.vector_store %arg5[%c0_72, %c8_73], %64 {strides = array<i32>} : memref<64x32xf32, #tpu.memory_space<vmem>>, vector<64x8xf32>,
    %c0_74 = arith.constant 0 : index
    %c2_75 = arith.constant 2 : index
    %c0_76 = arith.constant 0 : index
    %c0_77 = arith.constant 0 : index
    %66 = vector.load %arg1[%c0_74, %c2_75, %c0_76, %c0_77] : memref<1x10x10x8xf32, #tpu.memory_space<vmem>>, vector<1x8x8x8xf32>
    %67 = vector.shape_cast %66 : vector<1x8x8x8xf32> to vector<8x8x8xf32>
    %68 = vector.shape_cast %67 : vector<8x8x8xf32> to vector<64x8xf32>
    %c0_78 = arith.constant 0 : index
    %c16_79 = arith.constant 16 : index
    %69 = vector.load %arg5[%c0_78, %c16_79] : memref<64x32xf32, #tpu.memory_space<vmem>>, vector<64x8xf32>
    tpu.vector_store %arg5[%c0_78, %c16_79], %68 {strides = array<i32>} : memref<64x32xf32, #tpu.memory_space<vmem>>, vector<64x8xf32>,
    %c0_80 = arith.constant 0 : index
    %c2_81 = arith.constant 2 : index
    %c1_82 = arith.constant 1 : index
    %c0_83 = arith.constant 0 : index
    %70 = vector.load %arg1[%c0_80, %c2_81, %c1_82, %c0_83] : memref<1x10x10x8xf32, #tpu.memory_space<vmem>>, vector<1x8x8x8xf32>
    %71 = vector.shape_cast %70 : vector<1x8x8x8xf32> to vector<8x8x8xf32>
    %72 = vector.shape_cast %71 : vector<8x8x8xf32> to vector<64x8xf32>
    %c0_84 = arith.constant 0 : index
    %c24_85 = arith.constant 24 : index
    %73 = vector.load %arg5[%c0_84, %c24_85] : memref<64x32xf32, #tpu.memory_space<vmem>>, vector<64x8xf32>
    tpu.vector_store %arg5[%c0_84, %c24_85], %72 {strides = array<i32>} : memref<64x32xf32, #tpu.memory_space<vmem>>, vector<64x8xf32>,
    %c0_86 = arith.constant 0 : index
    %c0_87 = arith.constant 0 : index
    %74 = vector.load %arg5[%c0_86, %c0_87] : memref<64x32xf32, #tpu.memory_space<vmem>>, vector<64x32xf32>
    %c2_88 = arith.constant 2 : index
    %c0_89 = arith.constant 0 : index
    %c0_90 = arith.constant 0 : index
    %75 = vector.load %arg2[%c2_88, %c0_89, %c0_90] : memref<4x32x4xf32, #tpu.memory_space<vmem>>, vector<1x32x4xf32>
    %76 = vector.shape_cast %75 : vector<1x32x4xf32> to vector<32x4xf32>
    %cst_91 = arith.constant dense<0.000000e+00> : vector<64x4xf32>
    %77 = tpu.matmul %74, %76, %cst_91 {dimension_numbers = #tpu.dot_dimension_numbers<[1], [0], [0], [1], [0, 0, 1, 1], [], []>} : vector<64x32xf32>, vector<32x4xf32>, vector<64x4xf32> -> vector<64x4xf32>
    %c0_92 = arith.constant 0 : index
    %c8_93 = arith.constant 8 : index
    %78 = vector.load %arg6[%c0_92, %c8_93] : memref<64x16xf32, #tpu.memory_space<vmem>>, vector<64x4xf32>
    tpu.vector_store %arg6[%c0_92, %c8_93], %77 {strides = array<i32>} : memref<64x16xf32, #tpu.memory_space<vmem>>, vector<64x4xf32>,
    %cst_94 = arith.constant dense<0.000000e+00> : vector<4xf32>
    %79 = vector.multi_reduction <add>, %77, %cst_94 [0] : vector<64x4xf32> to vector<4xf32>
    %80 = vector.shape_cast %79 : vector<4xf32> to vector<1x4xf32>
    %81 = arith.addf %53, %80 : vector<1x4xf32>
    %82 = arith.mulf %77, %77 : vector<64x4xf32>
    %cst_95 = arith.constant dense<0.000000e+00> : vector<4xf32>
    %83 = vector.multi_reduction <add>, %82, %cst_95 [0] : vector<64x4xf32> to vector<4xf32>
    %84 = vector.shape_cast %83 : vector<4xf32> to vector<1x4xf32>
    %85 = arith.addf %57, %84 : vector<1x4xf32>
    %c0_96 = arith.constant 0 : index
    %c1_97 = arith.constant 1 : index
    %c1_98 = arith.constant 1 : index
    %c0_99 = arith.constant 0 : index
    %86 = vector.load %arg1[%c0_96, %c1_97, %c1_98, %c0_99] : memref<1x10x10x8xf32, #tpu.memory_space<vmem>>, vector<1x8x8x8xf32>
    %87 = vector.shape_cast %86 : vector<1x8x8x8xf32> to vector<8x8x8xf32>
    %88 = vector.shape_cast %87 : vector<8x8x8xf32> to vector<64x8xf32>
    %c0_100 = arith.constant 0 : index
    %c0_101 = arith.constant 0 : index
    %89 = vector.load %arg5[%c0_100, %c0_101] : memref<64x32xf32, #tpu.memory_space<vmem>>, vector<64x8xf32>
    tpu.vector_store %arg5[%c0_100, %c0_101], %88 {strides = array<i32>} : memref<64x32xf32, #tpu.memory_space<vmem>>, vector<64x8xf32>,
    %c0_102 = arith.constant 0 : index
    %c1_103 = arith.constant 1 : index
    %c2_104 = arith.constant 2 : index
    %c0_105 = arith.constant 0 : index
    %90 = vector.load %arg1[%c0_102, %c1_103, %c2_104, %c0_105] : memref<1x10x10x8xf32, #tpu.memory_space<vmem>>, vector<1x8x8x8xf32>
    %91 = vector.shape_cast %90 : vector<1x8x8x8xf32> to vector<8x8x8xf32>
    %92 = vector.shape_cast %91 : vector<8x8x8xf32> to vector<64x8xf32>
    %c0_106 = arith.constant 0 : index
    %c8_107 = arith.constant 8 : index
    %93 = vector.load %arg5[%c0_106, %c8_107] : memref<64x32xf32, #tpu.memory_space<vmem>>, vector<64x8xf32>
    tpu.vector_store %arg5[%c0_106, %c8_107], %92 {strides = array<i32>} : memref<64x32xf32, #tpu.memory_space<vmem>>, vector<64x8xf32>,
    %c0_108 = arith.constant 0 : index
    %c2_109 = arith.constant 2 : index
    %c1_110 = arith.constant 1 : index
    %c0_111 = arith.constant 0 : index
    %94 = vector.load %arg1[%c0_108, %c2_109, %c1_110, %c0_111] : memref<1x10x10x8xf32, #tpu.memory_space<vmem>>, vector<1x8x8x8xf32>
    %95 = vector.shape_cast %94 : vector<1x8x8x8xf32> to vector<8x8x8xf32>
    %96 = vector.shape_cast %95 : vector<8x8x8xf32> to vector<64x8xf32>
    %c0_112 = arith.constant 0 : index
    %c16_113 = arith.constant 16 : index
    %97 = vector.load %arg5[%c0_112, %c16_113] : memref<64x32xf32, #tpu.memory_space<vmem>>, vector<64x8xf32>
    tpu.vector_store %arg5[%c0_112, %c16_113], %96 {strides = array<i32>} : memref<64x32xf32, #tpu.memory_space<vmem>>, vector<64x8xf32>,
    %c0_114 = arith.constant 0 : index
    %c2_115 = arith.constant 2 : index
    %c2_116 = arith.constant 2 : index
    %c0_117 = arith.constant 0 : index
    %98 = vector.load %arg1[%c0_114, %c2_115, %c2_116, %c0_117] : memref<1x10x10x8xf32, #tpu.memory_space<vmem>>, vector<1x8x8x8xf32>
    %99 = vector.shape_cast %98 : vector<1x8x8x8xf32> to vector<8x8x8xf32>
    %100 = vector.shape_cast %99 : vector<8x8x8xf32> to vector<64x8xf32>
    %c0_118 = arith.constant 0 : index
    %c24_119 = arith.constant 24 : index
    %101 = vector.load %arg5[%c0_118, %c24_119] : memref<64x32xf32, #tpu.memory_space<vmem>>, vector<64x8xf32>
    tpu.vector_store %arg5[%c0_118, %c24_119], %100 {strides = array<i32>} : memref<64x32xf32, #tpu.memory_space<vmem>>, vector<64x8xf32>,
    %c0_120 = arith.constant 0 : index
    %c0_121 = arith.constant 0 : index
    %102 = vector.load %arg5[%c0_120, %c0_121] : memref<64x32xf32, #tpu.memory_space<vmem>>, vector<64x32xf32>
    %c3 = arith.constant 3 : index
    %c0_122 = arith.constant 0 : index
    %c0_123 = arith.constant 0 : index
    %103 = vector.load %arg2[%c3, %c0_122, %c0_123] : memref<4x32x4xf32, #tpu.memory_space<vmem>>, vector<1x32x4xf32>
    %104 = vector.shape_cast %103 : vector<1x32x4xf32> to vector<32x4xf32>
    %cst_124 = arith.constant dense<0.000000e+00> : vector<64x4xf32>
    %105 = tpu.matmul %102, %104, %cst_124 {dimension_numbers = #tpu.dot_dimension_numbers<[1], [0], [0], [1], [0, 0, 1, 1], [], []>} : vector<64x32xf32>, vector<32x4xf32>, vector<64x4xf32> -> vector<64x4xf32>
    %c0_125 = arith.constant 0 : index
    %c12 = arith.constant 12 : index
    %106 = vector.load %arg6[%c0_125, %c12] : memref<64x16xf32, #tpu.memory_space<vmem>>, vector<64x4xf32>
    tpu.vector_store %arg6[%c0_125, %c12], %105 {strides = array<i32>} : memref<64x16xf32, #tpu.memory_space<vmem>>, vector<64x4xf32>,
    %cst_126 = arith.constant dense<0.000000e+00> : vector<4xf32>
    %107 = vector.multi_reduction <add>, %105, %cst_126 [0] : vector<64x4xf32> to vector<4xf32>
    %108 = vector.shape_cast %107 : vector<4xf32> to vector<1x4xf32>
    %109 = arith.addf %81, %108 : vector<1x4xf32>
    %110 = arith.mulf %105, %105 : vector<64x4xf32>
    %cst_127 = arith.constant dense<0.000000e+00> : vector<4xf32>
    %111 = vector.multi_reduction <add>, %110, %cst_127 [0] : vector<64x4xf32> to vector<4xf32>
    %112 = vector.shape_cast %111 : vector<4xf32> to vector<1x4xf32>
    %113 = arith.addf %85, %112 : vector<1x4xf32>
    %cst_128 = arith.constant 3.906250e-03 : f32
    %114 = vector.broadcast %cst_128 : f32 to vector<1x4xf32>
    %115 = arith.mulf %109, %114 : vector<1x4xf32>
    %cst_129 = arith.constant 3.906250e-03 : f32
    %116 = vector.broadcast %cst_129 : f32 to vector<1x4xf32>
    %117 = arith.mulf %113, %116 : vector<1x4xf32>
    %118 = arith.mulf %115, %115 : vector<1x4xf32>
    %119 = arith.subf %117, %118 : vector<1x4xf32>
    %cst_130 = arith.constant 9.99999974E-6 : f32
    %120 = vector.broadcast %cst_130 : f32 to vector<1x4xf32>
    %121 = arith.addf %119, %120 : vector<1x4xf32>
    %122 = math.rsqrt %121 : vector<1x4xf32>
    %c0_131 = arith.constant 0 : index
    %c0_132 = arith.constant 0 : index
    %123 = vector.load %arg6[%c0_131, %c0_132] : memref<64x16xf32, #tpu.memory_space<vmem>>, vector<64x4xf32>
    %124 = vector.broadcast %115 : vector<1x4xf32> to vector<64x4xf32>
    %125 = arith.subf %123, %124 : vector<64x4xf32>
    %126 = vector.broadcast %122 : vector<1x4xf32> to vector<64x4xf32>
    %127 = arith.mulf %125, %126 : vector<64x4xf32>
    %cst_133 = arith.constant 0.000000e+00 : f32
    %128 = vector.broadcast %cst_133 : f32 to vector<64x4xf32>
    %129 = arith.cmpf oge, %127, %128 : vector<64x4xf32>
    %cst_134 = arith.constant 0.00999999977 : f32
    %130 = vector.broadcast %cst_134 : f32 to vector<64x4xf32>
    %131 = arith.mulf %130, %127 : vector<64x4xf32>
    %132 = arith.select %129, %127, %131 : vector<64x4xi1>, vector<64x4xf32>
    %133 = vector.shape_cast %132 : vector<64x4xf32> to vector<8x8x4xf32>
    %c0_135 = arith.constant 0 : index
    %c0_136 = arith.constant 0 : index
    %c0_137 = arith.constant 0 : index
    %c0_138 = arith.constant 0 : index
    %c0_139 = arith.constant 0 : index
    %134 = vector.load %arg4[%c0_135, %c0_136, %c0_137, %c0_138, %c0_139] : memref<1x8x2x8x16xf32, #tpu.memory_space<vmem>>, vector<1x8x1x8x4xf32>
    %135 = vector.shape_cast %134 : vector<1x8x1x8x4xf32> to vector<8x8x4xf32>
    %136 = vector.shape_cast %133 : vector<8x8x4xf32> to vector<1x8x1x8x4xf32>
    tpu.vector_store %arg4[%c0_135, %c0_136, %c0_137, %c0_138, %c0_139], %136 {strides = array<i32>} : memref<1x8x2x8x16xf32, #tpu.memory_space<vmem>>, vector<1x8x1x8x4xf32>,
    %c0_140 = arith.constant 0 : index
    %c4_141 = arith.constant 4 : index
    %137 = vector.load %arg6[%c0_140, %c4_141] : memref<64x16xf32, #tpu.memory_space<vmem>>, vector<64x4xf32>
    %138 = vector.broadcast %115 : vector<1x4xf32> to vector<64x4xf32>
    %139 = arith.subf %137, %138 : vector<64x4xf32>
    %140 = vector.broadcast %122 : vector<1x4xf32> to vector<64x4xf32>
    %141 = arith.mulf %139, %140 : vector<64x4xf32>
    %cst_142 = arith.constant 0.000000e+00 : f32
    %142 = vector.broadcast %cst_142 : f32 to vector<64x4xf32>
    %143 = arith.cmpf oge, %141, %142 : vector<64x4xf32>
    %cst_143 = arith.constant 0.00999999977 : f32
    %144 = vector.broadcast %cst_143 : f32 to vector<64x4xf32>
    %145 = arith.mulf %144, %141 : vector<64x4xf32>
    %146 = arith.select %143, %141, %145 : vector<64x4xi1>, vector<64x4xf32>
    %147 = vector.shape_cast %146 : vector<64x4xf32> to vector<8x8x4xf32>
    %c0_144 = arith.constant 0 : index
    %c0_145 = arith.constant 0 : index
    %c0_146 = arith.constant 0 : index
    %c0_147 = arith.constant 0 : index
    %c8_148 = arith.constant 8 : index
    %148 = vector.load %arg4[%c0_144, %c0_145, %c0_146, %c0_147, %c8_148] : memref<1x8x2x8x16xf32, #tpu.memory_space<vmem>>, vector<1x8x1x8x4xf32>
    %149 = vector.shape_cast %148 : vector<1x8x1x8x4xf32> to vector<8x8x4xf32>
    %150 = vector.shape_cast %147 : vector<8x8x4xf32> to vector<1x8x1x8x4xf32>
    tpu.vector_store %arg4[%c0_144, %c0_145, %c0_146, %c0_147, %c8_148], %150 {strides = array<i32>} : memref<1x8x2x8x16xf32, #tpu.memory_space<vmem>>, vector<1x8x1x8x4xf32>,
    %c0_149 = arith.constant 0 : index
    %c8_150 = arith.constant 8 : index
    %151 = vector.load %arg6[%c0_149, %c8_150] : memref<64x16xf32, #tpu.memory_space<vmem>>, vector<64x4xf32>
    %152 = vector.broadcast %115 : vector<1x4xf32> to vector<64x4xf32>
    %153 = arith.subf %151, %152 : vector<64x4xf32>
    %154 = vector.broadcast %122 : vector<1x4xf32> to vector<64x4xf32>
    %155 = arith.mulf %153, %154 : vector<64x4xf32>
    %cst_151 = arith.constant 0.000000e+00 : f32
    %156 = vector.broadcast %cst_151 : f32 to vector<64x4xf32>
    %157 = arith.cmpf oge, %155, %156 : vector<64x4xf32>
    %cst_152 = arith.constant 0.00999999977 : f32
    %158 = vector.broadcast %cst_152 : f32 to vector<64x4xf32>
    %159 = arith.mulf %158, %155 : vector<64x4xf32>
    %160 = arith.select %157, %155, %159 : vector<64x4xi1>, vector<64x4xf32>
    %161 = vector.shape_cast %160 : vector<64x4xf32> to vector<8x8x4xf32>
    %c0_153 = arith.constant 0 : index
    %c0_154 = arith.constant 0 : index
    %c1_155 = arith.constant 1 : index
    %c0_156 = arith.constant 0 : index
    %c0_157 = arith.constant 0 : index
    %162 = vector.load %arg4[%c0_153, %c0_154, %c1_155, %c0_156, %c0_157] : memref<1x8x2x8x16xf32, #tpu.memory_space<vmem>>, vector<1x8x1x8x4xf32>
    %163 = vector.shape_cast %162 : vector<1x8x1x8x4xf32> to vector<8x8x4xf32>
    %164 = vector.shape_cast %161 : vector<8x8x4xf32> to vector<1x8x1x8x4xf32>
    tpu.vector_store %arg4[%c0_153, %c0_154, %c1_155, %c0_156, %c0_157], %164 {strides = array<i32>} : memref<1x8x2x8x16xf32, #tpu.memory_space<vmem>>, vector<1x8x1x8x4xf32>,
    %c0_158 = arith.constant 0 : index
    %c12_159 = arith.constant 12 : index
    %165 = vector.load %arg6[%c0_158, %c12_159] : memref<64x16xf32, #tpu.memory_space<vmem>>, vector<64x4xf32>
    %166 = vector.broadcast %115 : vector<1x4xf32> to vector<64x4xf32>
    %167 = arith.subf %165, %166 : vector<64x4xf32>
    %168 = vector.broadcast %122 : vector<1x4xf32> to vector<64x4xf32>
    %169 = arith.mulf %167, %168 : vector<64x4xf32>
    %cst_160 = arith.constant 0.000000e+00 : f32
    %170 = vector.broadcast %cst_160 : f32 to vector<64x4xf32>
    %171 = arith.cmpf oge, %169, %170 : vector<64x4xf32>
    %cst_161 = arith.constant 0.00999999977 : f32
    %172 = vector.broadcast %cst_161 : f32 to vector<64x4xf32>
    %173 = arith.mulf %172, %169 : vector<64x4xf32>
    %174 = arith.select %171, %169, %173 : vector<64x4xi1>, vector<64x4xf32>
    %175 = vector.shape_cast %174 : vector<64x4xf32> to vector<8x8x4xf32>
    %c0_162 = arith.constant 0 : index
    %c0_163 = arith.constant 0 : index
    %c1_164 = arith.constant 1 : index
    %c0_165 = arith.constant 0 : index
    %c8_166 = arith.constant 8 : index
    %176 = vector.load %arg4[%c0_162, %c0_163, %c1_164, %c0_165, %c8_166] : memref<1x8x2x8x16xf32, #tpu.memory_space<vmem>>, vector<1x8x1x8x4xf32>
    %177 = vector.shape_cast %176 : vector<1x8x1x8x4xf32> to vector<8x8x4xf32>
    %178 = vector.shape_cast %175 : vector<8x8x4xf32> to vector<1x8x1x8x4xf32>
    tpu.vector_store %arg4[%c0_162, %c0_163, %c1_164, %c0_165, %c8_166], %178 {strides = array<i32>} : memref<1x8x2x8x16xf32, #tpu.memory_space<vmem>>, vector<1x8x1x8x4xf32>,
    %c0_167 = arith.constant 0 : index
    %c0_168 = arith.constant 0 : index
    %c0_169 = arith.constant 0 : index
    %c0_170 = arith.constant 0 : index
    %c0_171 = arith.constant 0 : index
    %179 = vector.load %arg3[%c0_167, %c0_168, %c0_169, %c0_170, %c0_171] : memref<1x8x2x8x8xf32, #tpu.memory_space<vmem>>, vector<1x8x2x8x4xf32>
    %180 = vector.shape_cast %179 : vector<1x8x2x8x4xf32> to vector<8x2x8x4xf32>
    %c0_172 = arith.constant 0 : index
    %c0_173 = arith.constant 0 : index
    %c0_174 = arith.constant 0 : index
    %c0_175 = arith.constant 0 : index
    %c4_176 = arith.constant 4 : index
    %181 = vector.load %arg4[%c0_172, %c0_173, %c0_174, %c0_175, %c4_176] : memref<1x8x2x8x16xf32, #tpu.memory_space<vmem>>, vector<1x8x2x8x4xf32>
    %182 = vector.shape_cast %181 : vector<1x8x2x8x4xf32> to vector<8x2x8x4xf32>
    %183 = vector.shape_cast %180 : vector<8x2x8x4xf32> to vector<1x8x2x8x4xf32>
    tpu.vector_store %arg4[%c0_172, %c0_173, %c0_174, %c0_175, %c4_176], %183 {strides = array<i32>} : memref<1x8x2x8x16xf32, #tpu.memory_space<vmem>>, vector<1x8x2x8x4xf32>,
    %c0_177 = arith.constant 0 : index
    %c0_178 = arith.constant 0 : index
    %c0_179 = arith.constant 0 : index
    %c0_180 = arith.constant 0 : index
    %c4_181 = arith.constant 4 : index
    %184 = vector.load %arg3[%c0_177, %c0_178, %c0_179, %c0_180, %c4_181] : memref<1x8x2x8x8xf32, #tpu.memory_space<vmem>>, vector<1x8x2x8x4xf32>
    %185 = vector.shape_cast %184 : vector<1x8x2x8x4xf32> to vector<8x2x8x4xf32>
    %c0_182 = arith.constant 0 : index
    %c0_183 = arith.constant 0 : index
    %c0_184 = arith.constant 0 : index
    %c0_185 = arith.constant 0 : index
    %c12_186 = arith.constant 12 : index
    %186 = vector.load %arg4[%c0_182, %c0_183, %c0_184, %c0_185, %c12_186] : memref<1x8x2x8x16xf32, #tpu.memory_space<vmem>>, vector<1x8x2x8x4xf32>
    %187 = vector.shape_cast %186 : vector<1x8x2x8x4xf32> to vector<8x2x8x4xf32>
    %188 = vector.shape_cast %185 : vector<8x2x8x4xf32> to vector<1x8x2x8x4xf32>
    tpu.vector_store %arg4[%c0_182, %c0_183, %c0_184, %c0_185, %c12_186], %188 {strides = array<i32>} : memref<1x8x2x8x16xf32, #tpu.memory_space<vmem>>, vector<1x8x2x8x4xf32>,
    return
  }
  func.func @transform_0(%arg0: i32) -> (i32, i32, i32, i32) {
    %c0_i32 = arith.constant 0 : i32
    %c0_i32_0 = arith.constant 0 : i32
    %c0_i32_1 = arith.constant 0 : i32
    %c0_i32_2 = arith.constant 0 : i32
    return %arg0, %c0_i32, %c0_i32_0, %c0_i32_1 : i32, i32, i32, i32
  }
  func.func @transform_1(%arg0: i32) -> (i32, i32, i32) {
    %c0_i32 = arith.constant 0 : i32
    %c0_i32_0 = arith.constant 0 : i32
    %c0_i32_1 = arith.constant 0 : i32
    %c0_i32_2 = arith.constant 0 : i32
    return %c0_i32, %c0_i32_0, %c0_i32_1 : i32, i32, i32
  }
  func.func @transform_2(%arg0: i32) -> (i32, i32, i32, i32, i32) {
    %c0_i32 = arith.constant 0 : i32
    %c0_i32_0 = arith.constant 0 : i32
    %c0_i32_1 = arith.constant 0 : i32
    %c0_i32_2 = arith.constant 0 : i32
    %c0_i32_3 = arith.constant 0 : i32
    return %arg0, %c0_i32, %c0_i32_0, %c0_i32_1, %c0_i32_2 : i32, i32, i32, i32, i32
  }
  func.func @transform_3(%arg0: i32) -> (i32, i32, i32, i32, i32) {
    %c0_i32 = arith.constant 0 : i32
    %c0_i32_0 = arith.constant 0 : i32
    %c0_i32_1 = arith.constant 0 : i32
    %c0_i32_2 = arith.constant 0 : i32
    %c0_i32_3 = arith.constant 0 : i32
    return %arg0, %c0_i32, %c0_i32_0, %c0_i32_1, %c0_i32_2 : i32, i32, i32, i32, i32
  }
}

</mosaic_0001>

<llo_original>
// kernel: tpu_custom_call.1
$region0: #{tpu_custom_call.1}
  #allocation0 [shape = 'u32[]', space=smem, size = 0x4, offset = 0x4, fixed_abs, tag = 'smem constant byte address 0x4 - core index']
  #allocation1 [shape = 'u32[144,128]{1,0:T(1,128)}', space=vmem, size = 0x12000, scoped, tag = 'internal scratch']
  #allocation2 [shape = 'f32[64,32]{1,0:T(8,128)}', space=vmem, size = 0x8000, scoped, tag = 'scratch operand']
  #allocation3 [shape = 'f32[64,16]{1,0:T(8,128)}', space=vmem, size = 0x8000, scoped, tag = 'scratch operand']
  %s0 = inlined_call_operand.vmem [shape: f32[2,10,10,8], index: 0, kind: input, shape index: {}]
  %s1 = inlined_call_operand.vmem [shape: f32[4,32,4], index: 1, kind: input, shape index: {}]
  %s2 = inlined_call_operand.vmem [shape: f32[2,8,2,8,8], index: 2, kind: input, shape index: {}]
  %s3 = inlined_call_operand.hbm [shape: f32[2,8,2,8,16], index: 3, kind: output, shape index: {}]
  %s4 = sld [smem:[#allocation0]]
  $region45: #{tpu_custom_call.1} parent=0
    _
  %s6 = ssub.s32 1, %s4
  %s7 = scalar_select 0, %s6, %s4
  $region1: #{tpu_custom_call.1} parent=0
    #allocation4 [shape = 'u8[131072]{0}', space=vmem, size = 0x20000, scoped, tag = 'output window, operand 0']
    #allocation5 [shape = 's32[2]{0}', space=sflag, size = 0x8, scoped, tag = 'scoped memory for tpu_custom_call.1']
    %8 = vsyncpa [#allocation5], 0
    %s9 = scalar_lea.sflag [#allocation5], 1
    %10 = vsyncpa %s9, 0
    loop: start=0, step=1, limit=4
    $region2: #{tpu_custom_call.1} parent=1 // loop_pre_header
      _
    $region3: #{tpu_custom_call.1} parent=1 // loop_header
      %s12 = sphi 0, %s16
      %p13 = scmp.ge.s32.totalorder %s12, 4
      %s22 = sphi 0, %s24
      %s25 = sphi 0, %s22
      %s26 = sphi 0, %s25
      %s42 = sphi 0, %s26
      %s46 = sphi 0, %s46
      %s48 = sphi 0, %s46
      %s49 = sphi 0, %s48
      %s63 = sphi 0, %s49
      %s69 = sphi 0, %s71
      %s72 = sphi 0, %s69
      %s73 = sphi 0, %s72
      %s89 = sphi 0, %s73
      %s95 = sphi 0, %s97
      %s98 = sphi 0, %s95
      %s99 = sphi 0, %s98
      %s115 = sphi 0, %s99
    $region4: #{tpu_custom_call.1} parent=1 // loop_header_branch
      %15 = sbr.rel (%p13) target = $region8
    $region5: #{tpu_custom_call.1} parent=1 // loop_body
      %s17 = ssub.s32 %s12, 1
      %s18 = ssub.s32 %s12, 2
      %s19 = sadd.s32 %s12, 1
      %s20 = ssub.s32 %s12, %s19
      %p21 = scmp.eq.s32.totalorder %s20, 0
      %s23 = sadd.s32 %s22, 1
      %s24 = scalar_select %p21, %s22, %s23
      %p27 = pneg %p21
      %p28 = scmp.eq.s32.totalorder %s12, 1
      %p29 = por %p27, %p28
      %p30 = scmp.ne.s32.totalorder %s22, %s25
      %p31 = scmp.eq.s32.totalorder %s12, 0
      %p32 = por %p30, %p31
      %p33 = scmp.ne.s32.totalorder %s22, %s25
      %p34 = scmp.eq.s32.totalorder %s17, 1
      %p35 = por %p33, %p34
      %p36 = scmp.ne.s32.totalorder %s25, %s26
      %p37 = scmp.eq.s32.totalorder %s17, 0
      %p38 = por %p36, %p37
      %p39 = scmp.ne.s32.totalorder %s25, %s26
      %p40 = scmp.eq.s32.totalorder %s18, 1
      %p41 = por %p39, %p40
      %p43 = scmp.ne.s32.totalorder %s26, %s42
      %p44 = scmp.eq.s32.totalorder %s18, 0
      %p45 = por %p43, %p44
      %s47 = sadd.s32 %s46, 1
      %p50 = scmp.eq.s32.totalorder %s12, 1
      %p51 = scmp.ne.s32.totalorder %s46, %s48
      %p52 = scmp.eq.s32.totalorder %s12, 0
      %p53 = por %p51, %p52
      %p54 = scmp.ne.s32.totalorder %s46, %s48
      %p55 = scmp.eq.s32.totalorder %s17, 1
      %p56 = por %p54, %p55
      %p57 = scmp.ne.s32.totalorder %s48, %s49
      %p58 = scmp.eq.s32.totalorder %s17, 0
      %p59 = por %p57, %p58
      %p60 = scmp.ne.s32.totalorder %s48, %s49
      %p61 = scmp.eq.s32.totalorder %s18, 1
      %p62 = por %p60, %p61
      %p64 = scmp.ne.s32.totalorder %s49, %s63
      %p65 = scmp.eq.s32.totalorder %s18, 0
      %p66 = por %p64, %p65
      %s67 = ssub.s32 %s12, %s19
      %p68 = scmp.eq.s32.totalorder %s67, 0
      %s70 = sadd.s32 %s69, 1
      %s71 = scalar_select %p68, %s69, %s70
      %p74 = pneg %p68
      %p75 = scmp.eq.s32.totalorder %s12, 1
      %p76 = por %p74, %p75
      %p77 = scmp.ne.s32.totalorder %s69, %s72
      %p78 = scmp.eq.s32.totalorder %s12, 0
      %p79 = por %p77, %p78
      %p80 = scmp.ne.s32.totalorder %s69, %s72
      %p81 = scmp.eq.s32.totalorder %s17, 1
      %p82 = por %p80, %p81
      %p83 = scmp.ne.s32.totalorder %s72, %s73
      %p84 = scmp.eq.s32.totalorder %s17, 0
      %p85 = por %p83, %p84
      %p86 = scmp.ne.s32.totalorder %s72, %s73
      %p87 = scmp.eq.s32.totalorder %s18, 1
      %p88 = por %p86, %p87
      %p90 = scmp.ne.s32.totalorder %s73, %s89
      %p91 = scmp.eq.s32.totalorder %s18, 0
      %p92 = por %p90, %p91
      %s93 = ssub.s32 %s12, %s19
      %p94 = scmp.eq.s32.totalorder %s93, 0
      %s96 = sadd.s32 %s95, 1
      %s97 = scalar_select %p94, %s95, %s96
      %p100 = pneg %p94
      %p101 = scmp.eq.s32.totalorder %s12, 1
      %p102 = por %p100, %p101
      %p103 = scmp.ne.s32.totalorder %s95, %s98
      %p104 = scmp.eq.s32.totalorder %s12, 0
      %p105 = por %p103, %p104
      %p106 = scmp.ne.s32.totalorder %s95, %s98
      %p107 = scmp.eq.s32.totalorder %s17, 1
      %p108 = por %p106, %p107
      %p109 = scmp.ne.s32.totalorder %s98, %s99
      %p110 = scmp.eq.s32.totalorder %s17, 0
      %p111 = por %p109, %p110
      %p112 = scmp.ne.s32.totalorder %s98, %s99
      %p113 = scmp.eq.s32.totalorder %s18, 1
      %p114 = por %p112, %p113
      %p116 = scmp.ne.s32.totalorder %s99, %s115
      %p117 = scmp.eq.s32.totalorder %s18, 0
      %p118 = por %p116, %p117
      %p119 = scmp.le.s32.totalorder 1, %s12
      %p120 = scmp.lt.s32.totalorder %s12, 3
      %p121 = pnand %p119, %p120
      %p122 = pneg %p121
      // Predicated region
      $region9: #{tpu_custom_call.1} parent=5 // pred_check
        _
      $region10: #{tpu_custom_call.1} parent=5 // pred_check_branch
        %124 = sbr.rel (%p121) target = $region12
      $region11: #{tpu_custom_call.1} parent=5 // pred_region
        %s125 = ssub.s32 %s12, 1
        // Predicated region
        $region13: #{tpu_custom_call.1} parent=11 // pred_check
          %p126 = pneg %p59
        $region14: #{tpu_custom_call.1} parent=11 // pred_check_branch
          %128 = sbr.rel (%p126) target = $region16
        $region15: #{tpu_custom_call.1} parent=11 // pred_region
          _
        $region16: #{tpu_custom_call.1} parent=11 // pred_fallthru
          _
      $region12: #{tpu_custom_call.1} parent=5 // pred_fallthru
        _
      %p129 = scmp.lt.s32.totalorder %s12, 2
      // Predicated region
      $region17: #{tpu_custom_call.1} parent=5 // pred_check
        %p130 = pneg %p129
      $region18: #{tpu_custom_call.1} parent=5 // pred_check_branch
        %132 = sbr.rel (%p130) target = $region20
      $region19: #{tpu_custom_call.1} parent=5 // pred_region
        // Predicated region
        $region21: #{tpu_custom_call.1} parent=19 // pred_check
          %p133 = pneg %p32
        $region22: #{tpu_custom_call.1} parent=19 // pred_check_branch
          %135 = sbr.rel (%p133) target = $region24
        $region23: #{tpu_custom_call.1} parent=19 // pred_region
          %p136 = scmp.lt.s32.totalorder %s12, 1
          %s137 = scalar_select %p136, %s12, 1
          %s138 = smul.addr %s137, 20
          %s139 = smul.addr %s138, 8
          %s140 = scalar_lea.vmem %s0, %s139
        $region24: #{tpu_custom_call.1} parent=19 // pred_fallthru
          _
        // Predicated region
        $region25: #{tpu_custom_call.1} parent=19 // pred_check
          %p141 = pneg %p79
        $region26: #{tpu_custom_call.1} parent=19 // pred_check_branch
          %143 = sbr.rel (%p141) target = $region28
        $region27: #{tpu_custom_call.1} parent=19 // pred_region
          %p144 = scmp.lt.s32.totalorder %s12, 1
          %s145 = scalar_select %p144, %s12, 1
          %s146 = smul.addr %s145, 16
          %s147 = smul.addr %s146, 8
          %s148 = scalar_lea.vmem %s2, %s147
        $region28: #{tpu_custom_call.1} parent=19 // pred_fallthru
          _
      $region20: #{tpu_custom_call.1} parent=5 // pred_fallthru
        _
      %p149 = scmp.le.s32.totalorder 1, %s12
      %p150 = scmp.lt.s32.totalorder %s12, 3
      %p151 = pnand %p149, %p150
      %p152 = pneg %p151
      // Predicated region
      $region29: #{tpu_custom_call.1} parent=5 // pred_check
        _
      $region30: #{tpu_custom_call.1} parent=5 // pred_check_branch
        %154 = sbr.rel (%p151) target = $region32
      $region31: #{tpu_custom_call.1} parent=5 // pred_region
        %s155 = ssub.s32 %s12, 1
        %p156 = scmp.lt.s32.totalorder %s17, 1
        %s157 = scalar_select %p156, %s17, 1
        %s158 = smul.addr %s157, 20
        %s159 = smul.addr %s158, 8
        %s160 = scalar_lea.vmem %s0, %s159
        %p161 = pneg %p38
        %p162 = pneg %p35
        %p163 = pneg %p59
        %p164 = pneg %p56
        %p165 = scmp.lt.s32.totalorder %s17, 1
        %s166 = scalar_select %p165, %s17, 1
        %s167 = smul.addr %s166, 16
        %s168 = smul.addr %s167, 8
        %s169 = scalar_lea.vmem %s2, %s168
        %p170 = pneg %p85
        %p171 = pneg %p82
        %p172 = pneg %p111
        %p173 = pneg %p108
        %s174 = sand.u32 %s98, 1
        %s175 = scalar_lea.sflag [#allocation5], %s174
        %s176 = sand.u32 %s98, 1
        %s177 = smul.addr %s176, 128
        %s178 = scalar_lea.vmem [#allocation4], %s177
        %p179 = scmp.lt.s32.totalorder %s17, 1
        %s180 = scalar_select %p179, %s17, 1
        %s181 = smul.addr %s180, 20
        %s182 = smul.addr %s181, 8
        %s183 = scalar_lea.vmem %s0, %s182
        %p184 = scmp.lt.s32.totalorder %s17, 1
        %s185 = scalar_select %p184, %s17, 1
        %s186 = smul.addr %s185, 16
        %s187 = smul.addr %s186, 8
        %s188 = scalar_lea.vmem %s2, %s187
        %v189 = vld [vmem:[%s183] sm:$0xff]
        %v190 = vld [vmem:[%s183 + $0x10] sm:$0xff]
        %v191 = vld [vmem:[%s183 + $0x20] sm:$0xff]
        %v192 = vld [vmem:[%s183 + $0x30] sm:$0xff]
        %v193 = vld [vmem:[%s183 + $0x40] sm:$0xff]
        %v194 = vld [vmem:[%s183 + $0x50] sm:$0xff]
        %v195 = vld [vmem:[%s183 + $0x60] sm:$0xff]
        %v196 = vld [vmem:[%s183 + $0x70] sm:$0xff]
        %vm197 = vcmask 64512
        %198 = vst.msk [vmem:[#allocation2] sm:$0xff] %vm197, %v189
        %199 = vst.msk [vmem:[#allocation2 + $0x8] sm:$0xff] %vm197, %v190
        %200 = vst.msk [vmem:[#allocation2 + $0x10] sm:$0xff] %vm197, %v191
        %201 = vst.msk [vmem:[#allocation2 + $0x18] sm:$0xff] %vm197, %v192
        %202 = vst.msk [vmem:[#allocation2 + $0x20] sm:$0xff] %vm197, %v193
        %203 = vst.msk [vmem:[#allocation2 + $0x28] sm:$0xff] %vm197, %v194
        %204 = vst.msk [vmem:[#allocation2 + $0x30] sm:$0xff] %vm197, %v195
        %205 = vst.msk [vmem:[#allocation2 + $0x38] sm:$0xff] %vm197, %v196
        %v206 = vld [vmem:[%s183 + $0x1] sm:$0xff]
        %v207 = vld [vmem:[%s183 + $0x11] sm:$0xff]
        %v208 = vld [vmem:[%s183 + $0x21] sm:$0xff]
        %v209 = vld [vmem:[%s183 + $0x31] sm:$0xff]
        %v210 = vld [vmem:[%s183 + $0x41] sm:$0xff]
        %v211 = vld [vmem:[%s183 + $0x51] sm:$0xff]
        %v212 = vld [vmem:[%s183 + $0x61] sm:$0xff]
        %v213 = vld [vmem:[%s183 + $0x71] sm:$0xff]
        %222 = vrot.lane.b32.xlu0 %v206, 8
        %v223 = vpop.permute.xlu0 %222
        %224 = vrot.lane.b32.xlu0 %v207, 8
        %v225 = vpop.permute.xlu0 %224
        %226 = vrot.lane.b32.xlu0 %v208, 8
        %v227 = vpop.permute.xlu0 %226
        %228 = vrot.lane.b32.xlu0 %v209, 8
        %v229 = vpop.permute.xlu0 %228
        %230 = vrot.lane.b32.xlu0 %v210, 8
        %v231 = vpop.permute.xlu0 %230
        %232 = vrot.lane.b32.xlu0 %v211, 8
        %v233 = vpop.permute.xlu0 %232
        %234 = vrot.lane.b32.xlu0 %v212, 8
        %v235 = vpop.permute.xlu0 %234
        %236 = vrot.lane.b32.xlu0 %v213, 8
        %v237 = vpop.permute.xlu0 %236
        %vm246 = vcmask 130112
        %247 = vst.msk [vmem:[#allocation2] sm:$0xff] %vm246, %v223
        %248 = vst.msk [vmem:[#allocation2 + $0x8] sm:$0xff] %vm246, %v225
        %249 = vst.msk [vmem:[#allocation2 + $0x10] sm:$0xff] %vm246, %v227
        %250 = vst.msk [vmem:[#allocation2 + $0x18] sm:$0xff] %vm246, %v229
        %251 = vst.msk [vmem:[#allocation2 + $0x20] sm:$0xff] %vm246, %v231
        %252 = vst.msk [vmem:[#allocation2 + $0x28] sm:$0xff] %vm246, %v233
        %253 = vst.msk [vmem:[#allocation2 + $0x30] sm:$0xff] %vm246, %v235
        %254 = vst.msk [vmem:[#allocation2 + $0x38] sm:$0xff] %vm246, %v237
        %s255 = scalar_lea.vmem %s183, 16
        %v256 = vld [vmem:[%s255] sm:$0xff]
        %v257 = vld [vmem:[%s255 + $0x10] sm:$0xff]
        %v258 = vld [vmem:[%s255 + $0x20] sm:$0xff]
        %v259 = vld [vmem:[%s255 + $0x30] sm:$0xff]
        %v260 = vld [vmem:[%s255 + $0x40] sm:$0xff]
        %v261 = vld [vmem:[%s255 + $0x50] sm:$0xff]
        %v262 = vld [vmem:[%s255 + $0x60] sm:$0xff]
        %v263 = vld [vmem:[%s255 + $0x70] sm:$0xff]
        %272 = vrot.lane.b32.xlu0 %v256, 16
        %v273 = vpop.permute.xlu0 %272
        %274 = vrot.lane.b32.xlu0 %v257, 16
        %v275 = vpop.permute.xlu0 %274
        %276 = vrot.lane.b32.xlu0 %v258, 16
        %v277 = vpop.permute.xlu0 %276
        %278 = vrot.lane.b32.xlu0 %v259, 16
        %v279 = vpop.permute.xlu0 %278
        %280 = vrot.lane.b32.xlu0 %v260, 16
        %v281 = vpop.permute.xlu0 %280
        %282 = vrot.lane.b32.xlu0 %v261, 16
        %v283 = vpop.permute.xlu0 %282
        %284 = vrot.lane.b32.xlu0 %v262, 16
        %v285 = vpop.permute.xlu0 %284
        %286 = vrot.lane.b32.xlu0 %v263, 16
        %v287 = vpop.permute.xlu0 %286
        %vm296 = vcmask 195712
        %297 = vst.msk [vmem:[#allocation2] sm:$0xff] %vm296, %v273
        %298 = vst.msk [vmem:[#allocation2 + $0x8] sm:$0xff] %vm296, %v275
        %299 = vst.msk [vmem:[#allocation2 + $0x10] sm:$0xff] %vm296, %v277
        %300 = vst.msk [vmem:[#allocation2 + $0x18] sm:$0xff] %vm296, %v279
        %301 = vst.msk [vmem:[#allocation2 + $0x20] sm:$0xff] %vm296, %v281
        %302 = vst.msk [vmem:[#allocation2 + $0x28] sm:$0xff] %vm296, %v283
        %303 = vst.msk [vmem:[#allocation2 + $0x30] sm:$0xff] %vm296, %v285
        %304 = vst.msk [vmem:[#allocation2 + $0x38] sm:$0xff] %vm296, %v287
        %v305 = vld [vmem:[%s255 + $0x1] sm:$0xff]
        %v306 = vld [vmem:[%s255 + $0x11] sm:$0xff]
        %v307 = vld [vmem:[%s255 + $0x21] sm:$0xff]
        %v308 = vld [vmem:[%s255 + $0x31] sm:$0xff]
        %v309 = vld [vmem:[%s255 + $0x41] sm:$0xff]
        %v310 = vld [vmem:[%s255 + $0x51] sm:$0xff]
        %v311 = vld [vmem:[%s255 + $0x61] sm:$0xff]
        %v312 = vld [vmem:[%s255 + $0x71] sm:$0xff]
        %321 = vrot.lane.b32.xlu0 %v305, 24
        %v322 = vpop.permute.xlu0 %321
        %323 = vrot.lane.b32.xlu0 %v306, 24
        %v324 = vpop.permute.xlu0 %323
        %325 = vrot.lane.b32.xlu0 %v307, 24
        %v326 = vpop.permute.xlu0 %325
        %327 = vrot.lane.b32.xlu0 %v308, 24
        %v328 = vpop.permute.xlu0 %327
        %329 = vrot.lane.b32.xlu0 %v309, 24
        %v330 = vpop.permute.xlu0 %329
        %331 = vrot.lane.b32.xlu0 %v310, 24
        %v332 = vpop.permute.xlu0 %331
        %333 = vrot.lane.b32.xlu0 %v311, 24
        %v334 = vpop.permute.xlu0 %333
        %335 = vrot.lane.b32.xlu0 %v312, 24
        %v336 = vpop.permute.xlu0 %335
        %vm345 = vcmask 261312
        %346 = vst.msk [vmem:[#allocation2] sm:$0xff] %vm345, %v322
        %347 = vst.msk [vmem:[#allocation2 + $0x8] sm:$0xff] %vm345, %v324
        %348 = vst.msk [vmem:[#allocation2 + $0x10] sm:$0xff] %vm345, %v326
        %349 = vst.msk [vmem:[#allocation2 + $0x18] sm:$0xff] %vm345, %v328
        %350 = vst.msk [vmem:[#allocation2 + $0x20] sm:$0xff] %vm345, %v330
        %351 = vst.msk [vmem:[#allocation2 + $0x28] sm:$0xff] %vm345, %v332
        %352 = vst.msk [vmem:[#allocation2 + $0x30] sm:$0xff] %vm345, %v334
        %353 = vst.msk [vmem:[#allocation2 + $0x38] sm:$0xff] %vm345, %v336
        %v354 = vld [vmem:[#allocation2] sm:$0xff]
        %v355 = vld [vmem:[#allocation2 + $0x8] sm:$0xff]
        %v356 = vld [vmem:[#allocation2 + $0x10] sm:$0xff]
        %v357 = vld [vmem:[#allocation2 + $0x18] sm:$0xff]
        %v358 = vld [vmem:[#allocation2 + $0x20] sm:$0xff]
        %v359 = vld [vmem:[#allocation2 + $0x28] sm:$0xff]
        %v360 = vld [vmem:[#allocation2 + $0x30] sm:$0xff]
        %v361 = vld [vmem:[#allocation2 + $0x38] sm:$0xff]
        %v362 = vld [vmem:[%s1] sm:$0xff]
        %v363 = vld [vmem:[%s1 + $0x8] sm:$0xff]
        %v364 = vld [vmem:[%s1 + $0x10] sm:$0xff]
        %v365 = vld [vmem:[%s1 + $0x18] sm:$0xff]
        %vm366 = vcmask 261120
        %v368 = vsel %vm366, %v354, 0
        %v371 = vsel %vm366, %v355, 0
        %v374 = vsel %vm366, %v356, 0
        %v377 = vsel %vm366, %v357, 0
        %v380 = vsel %vm366, %v358, 0
        %v383 = vsel %vm366, %v359, 0
        %v386 = vsel %vm366, %v360, 0
        %v389 = vsel %vm366, %v361, 0
        %391 = vmatprep.subr.mxu0 0.0
        %392 = vmatpush1.msra.mxu0 %v362
        %393 = vmatprep.subr.mxu0 0.0
        %394 = vmatpush1.msra.mxu0 %v363
        %395 = vmatprep.subr.mxu0 0.0
        %396 = vmatpush1.msra.mxu0 %v364
        %397 = vmatprep.subr.mxu0 0.0
        %398 = vmatpush1.msra.mxu0 %v365
        %399 = vmatprep.subr.mxu0 0.0
        %400 = vmatpush1.msra.mxu0 0.0
        %401 = vmatprep.subr.mxu0 0.0
        %402 = vmatpush1.msra.mxu0 0.0
        %403 = vmatprep.subr.mxu0 0.0
        %404 = vmatpush1.msra.mxu0 0.0
        %405 = vmatprep.subr.mxu0 0.0
        %406 = vmatpush1.msra.mxu0 0.0
        %407 = vmatprep.subr.mxu0 0.0
        %408 = vmatpush1.msra.mxu0 0.0
        %409 = vmatprep.subr.mxu0 0.0
        %410 = vmatpush1.msra.mxu0 0.0
        %411 = vmatprep.subr.mxu0 0.0
        %412 = vmatpush1.msra.mxu0 0.0
        %413 = vmatprep.subr.mxu0 0.0
        %414 = vmatpush1.msra.mxu0 0.0
        %415 = vmatprep.subr.mxu0 0.0
        %416 = vmatpush1.msra.mxu0 0.0
        %417 = vmatprep.subr.mxu0 0.0
        %418 = vmatpush1.msra.mxu0 0.0
        %419 = vmatprep.subr.mxu0 0.0
        %420 = vmatpush1.msra.mxu0 0.0
        %421 = vmatprep.subr.mxu0 0.0
        %422 = vmatpush1.msra.mxu0 0.0
        %423 = vmatprep.subr.mxu0 0.0
        %424 = vmatpush1.msra.mxu0 0.0
        %425 = vmatprep.subr.mxu0 0.0
        %426 = vmatpush1.msra.mxu0 0.0
        %427 = vmatprep.subr.mxu0 0.0
        %428 = vmatpush1.msra.mxu0 0.0
        %429 = vmatprep.subr.mxu0 0.0
        %430 = vmatpush1.msra.mxu0 0.0
        %431 = vmatprep.subr.mxu0 0.0
        %432 = vmatpush1.msra.mxu0 0.0
        %433 = vmatprep.subr.mxu0 0.0
        %434 = vmatpush1.msra.mxu0 0.0
        %435 = vmatprep.subr.mxu0 0.0
        %436 = vmatpush1.msra.mxu0 0.0
        %437 = vmatprep.subr.mxu0 0.0
        %438 = vmatpush1.msra.mxu0 0.0
        %439 = vmatprep.subr.mxu0 0.0
        %440 = vmatpush1.msra.mxu0 0.0
        %441 = vmatprep.subr.mxu0 0.0
        %442 = vmatpush1.msra.mxu0 0.0
        %443 = vmatprep.subr.mxu0 0.0
        %444 = vmatpush1.msra.mxu0 0.0
        %445 = vmatprep.subr.mxu0 0.0
        %446 = vmatpush1.msra.mxu0 0.0
        %447 = vmatprep.subr.mxu0 0.0
        %448 = vmatpush1.msra.mxu0 0.0
        %449 = vmatprep.subr.mxu0 0.0
        %450 = vmatpush1.msra.mxu0 0.0
        %451 = vmatprep.subr.mxu0 0.0
        %452 = vmatpush1.msra.mxu0 0.0
        %453 = vmatprep.subr.mxu0 0.0
        %454 = vmatpush1.msra.mxu0 0.0
        %455 = vmatprep.mubr.f32.mxu0 0.0
        %456 = vmatmul.mubr.f32.gmra.mrb[0].mxu0 %v368
        %v457 = vpop.f32.mrb[0].mxu0
        %v458 = vadd.f32 0.0, %v457
        %v459 = vpop.f32.mrb[0].mxu0
        %460 = vmatprep.mubr.f32.mxu0 0.0
        %461 = vmatmul.mubr.f32.gmra.mrb[0].mxu0 %v371
        %v462 = vpop.f32.mrb[0].mxu0
        %v463 = vadd.f32 0.0, %v462
        %v464 = vpop.f32.mrb[0].mxu0
        %465 = vmatprep.mubr.f32.mxu0 0.0
        %466 = vmatmul.mubr.f32.gmra.mrb[0].mxu0 %v374
        %v467 = vpop.f32.mrb[0].mxu0
        %v468 = vadd.f32 0.0, %v467
        %v469 = vpop.f32.mrb[0].mxu0
        %470 = vmatprep.mubr.f32.mxu0 0.0
        %471 = vmatmul.mubr.f32.gmra.mrb[0].mxu0 %v377
        %v472 = vpop.f32.mrb[0].mxu0
        %v473 = vadd.f32 0.0, %v472
        %v474 = vpop.f32.mrb[0].mxu0
        %475 = vmatprep.mubr.f32.mxu0 0.0
        %476 = vmatmul.mubr.f32.gmra.mrb[0].mxu0 %v380
        %v477 = vpop.f32.mrb[0].mxu0
        %v478 = vadd.f32 0.0, %v477
        %v479 = vpop.f32.mrb[0].mxu0
        %480 = vmatprep.mubr.f32.mxu0 0.0
        %481 = vmatmul.mubr.f32.gmra.mrb[0].mxu0 %v383
        %v482 = vpop.f32.mrb[0].mxu0
        %v483 = vadd.f32 0.0, %v482
        %v484 = vpop.f32.mrb[0].mxu0
        %485 = vmatprep.mubr.f32.mxu0 0.0
        %486 = vmatmul.mubr.f32.gmra.mrb[0].mxu0 %v386
        %v487 = vpop.f32.mrb[0].mxu0
        %v488 = vadd.f32 0.0, %v487
        %v489 = vpop.f32.mrb[0].mxu0
        %490 = vmatprep.mubr.f32.mxu0 0.0
        %491 = vmatmul.mubr.f32.gmra.mrb[0].mxu0 %v389
        %v492 = vpop.f32.mrb[0].mxu0
        %v493 = vadd.f32 0.0, %v492
        %v494 = vpop.f32.mrb[0].mxu0
        %495 = vdwg.mxu0
        %vm496 = vcmask 31744
        %497 = vst.msk [vmem:[#allocation3] sm:$0xff] %vm496, %v458
        %498 = vst.msk [vmem:[#allocation3 + $0x8] sm:$0xff] %vm496, %v463
        %499 = vst.msk [vmem:[#allocation3 + $0x10] sm:$0xff] %vm496, %v468
        %500 = vst.msk [vmem:[#allocation3 + $0x18] sm:$0xff] %vm496, %v473
        %501 = vst.msk [vmem:[#allocation3 + $0x20] sm:$0xff] %vm496, %v478
        %502 = vst.msk [vmem:[#allocation3 + $0x28] sm:$0xff] %vm496, %v483
        %503 = vst.msk [vmem:[#allocation3 + $0x30] sm:$0xff] %vm496, %v488
        %504 = vst.msk [vmem:[#allocation3 + $0x38] sm:$0xff] %vm496, %v493
        %v505 = vsel %vm496, %v458, 0.0
        %v506 = vsel %vm496, %v463, 0.0
        %v507 = vadd.f32 %v505, %v506
        %v508 = vsel %vm496, %v468, 0.0
        %v509 = vadd.f32 %v507, %v508
        %v510 = vsel %vm496, %v473, 0.0
        %v511 = vadd.f32 %v509, %v510
        %v512 = vsel %vm496, %v478, 0.0
        %v513 = vadd.f32 %v511, %v512
        %v514 = vsel %vm496, %v483, 0.0
        %v515 = vadd.f32 %v513, %v514
        %v516 = vsel %vm496, %v488, 0.0
        %v517 = vadd.f32 %v515, %v516
        %v518 = vsel %vm496, %v493, 0.0
        %v519 = vadd.f32 %v517, %v518
        %v520 = vrot.slane %v519, 4
        %v521 = vadd.f32 %v519, %v520
        %v522 = vrot.slane %v521, 2
        %v523 = vadd.f32 %v521, %v522
        %v524 = vrot.slane %v523, 1
        %v525 = vadd.f32 %v523, %v524
        %v526 = vadd.f32 %v525, 0.0
        %v527 = vmul.f32 %v458, %v458
        %v528 = vmul.f32 %v463, %v463
        %v529 = vmul.f32 %v468, %v468
        %v530 = vmul.f32 %v473, %v473
        %v531 = vmul.f32 %v478, %v478
        %v532 = vmul.f32 %v483, %v483
        %v533 = vmul.f32 %v488, %v488
        %v534 = vmul.f32 %v493, %v493
        %v535 = vsel %vm496, %v527, 0.0
        %v536 = vsel %vm496, %v528, 0.0
        %v537 = vadd.f32 %v535, %v536
        %v538 = vsel %vm496, %v529, 0.0
        %v539 = vadd.f32 %v537, %v538
        %v540 = vsel %vm496, %v530, 0.0
        %v541 = vadd.f32 %v539, %v540
        %v542 = vsel %vm496, %v531, 0.0
        %v543 = vadd.f32 %v541, %v542
        %v544 = vsel %vm496, %v532, 0.0
        %v545 = vadd.f32 %v543, %v544
        %v546 = vsel %vm496, %v533, 0.0
        %v547 = vadd.f32 %v545, %v546
        %v548 = vsel %vm496, %v534, 0.0
        %v549 = vadd.f32 %v547, %v548
        %v550 = vrot.slane %v549, 4
        %v551 = vadd.f32 %v549, %v550
        %v552 = vrot.slane %v551, 2
        %v553 = vadd.f32 %v551, %v552
        %v554 = vrot.slane %v553, 1
        %v555 = vadd.f32 %v553, %v554
        %v556 = vadd.f32 %v555, 0.0
        %v557 = vld [vmem:[%s183 + $0x1] sm:$0xff]
        %v558 = vld [vmem:[%s183 + $0x11] sm:$0xff]
        %v559 = vld [vmem:[%s183 + $0x21] sm:$0xff]
        %v560 = vld [vmem:[%s183 + $0x31] sm:$0xff]
        %v561 = vld [vmem:[%s183 + $0x41] sm:$0xff]
        %v562 = vld [vmem:[%s183 + $0x51] sm:$0xff]
        %v563 = vld [vmem:[%s183 + $0x61] sm:$0xff]
        %v564 = vld [vmem:[%s183 + $0x71] sm:$0xff]
        %565 = vst.msk [vmem:[#allocation2] sm:$0xff] %vm197, %v557
        %566 = vst.msk [vmem:[#allocation2 + $0x8] sm:$0xff] %vm197, %v558
        %567 = vst.msk [vmem:[#allocation2 + $0x10] sm:$0xff] %vm197, %v559
        %568 = vst.msk [vmem:[#allocation2 + $0x18] sm:$0xff] %vm197, %v560
        %569 = vst.msk [vmem:[#allocation2 + $0x20] sm:$0xff] %vm197, %v561
        %570 = vst.msk [vmem:[#allocation2 + $0x28] sm:$0xff] %vm197, %v562
        %571 = vst.msk [vmem:[#allocation2 + $0x30] sm:$0xff] %vm197, %v563
        %572 = vst.msk [vmem:[#allocation2 + $0x38] sm:$0xff] %vm197, %v564
        %v573 = vld [vmem:[%s183 + $0x2] sm:$0xff]
        %v574 = vld [vmem:[%s183 + $0x12] sm:$0xff]
        %v575 = vld [vmem:[%s183 + $0x22] sm:$0xff]
        %v576 = vld [vmem:[%s183 + $0x32] sm:$0xff]
        %v577 = vld [vmem:[%s183 + $0x42] sm:$0xff]
        %v578 = vld [vmem:[%s183 + $0x52] sm:$0xff]
        %v579 = vld [vmem:[%s183 + $0x62] sm:$0xff]
        %v580 = vld [vmem:[%s183 + $0x72] sm:$0xff]
        %589 = vrot.lane.b32.xlu0 %v573, 8
        %v590 = vpop.permute.xlu0 %589
        %591 = vrot.lane.b32.xlu0 %v574, 8
        %v592 = vpop.permute.xlu0 %591
        %593 = vrot.lane.b32.xlu0 %v575, 8
        %v594 = vpop.permute.xlu0 %593
        %595 = vrot.lane.b32.xlu0 %v576, 8
        %v596 = vpop.permute.xlu0 %595
        %597 = vrot.lane.b32.xlu0 %v577, 8
        %v598 = vpop.permute.xlu0 %597
        %599 = vrot.lane.b32.xlu0 %v578, 8
        %v600 = vpop.permute.xlu0 %599
        %601 = vrot.lane.b32.xlu0 %v579, 8
        %v602 = vpop.permute.xlu0 %601
        %603 = vrot.lane.b32.xlu0 %v580, 8
        %v604 = vpop.permute.xlu0 %603
        %613 = vst.msk [vmem:[#allocation2] sm:$0xff] %vm246, %v590
        %614 = vst.msk [vmem:[#allocation2 + $0x8] sm:$0xff] %vm246, %v592
        %615 = vst.msk [vmem:[#allocation2 + $0x10] sm:$0xff] %vm246, %v594
        %616 = vst.msk [vmem:[#allocation2 + $0x18] sm:$0xff] %vm246, %v596
        %617 = vst.msk [vmem:[#allocation2 + $0x20] sm:$0xff] %vm246, %v598
        %618 = vst.msk [vmem:[#allocation2 + $0x28] sm:$0xff] %vm246, %v600
        %619 = vst.msk [vmem:[#allocation2 + $0x30] sm:$0xff] %vm246, %v602
        %620 = vst.msk [vmem:[#allocation2 + $0x38] sm:$0xff] %vm246, %v604
        %v621 = vld [vmem:[%s255 + $0x1] sm:$0xff]
        %v622 = vld [vmem:[%s255 + $0x11] sm:$0xff]
        %v623 = vld [vmem:[%s255 + $0x21] sm:$0xff]
        %v624 = vld [vmem:[%s255 + $0x31] sm:$0xff]
        %v625 = vld [vmem:[%s255 + $0x41] sm:$0xff]
        %v626 = vld [vmem:[%s255 + $0x51] sm:$0xff]
        %v627 = vld [vmem:[%s255 + $0x61] sm:$0xff]
        %v628 = vld [vmem:[%s255 + $0x71] sm:$0xff]
        %637 = vrot.lane.b32.xlu0 %v621, 16
        %v638 = vpop.permute.xlu0 %637
        %639 = vrot.lane.b32.xlu0 %v622, 16
        %v640 = vpop.permute.xlu0 %639
        %641 = vrot.lane.b32.xlu0 %v623, 16
        %v642 = vpop.permute.xlu0 %641
        %643 = vrot.lane.b32.xlu0 %v624, 16
        %v644 = vpop.permute.xlu0 %643
        %645 = vrot.lane.b32.xlu0 %v625, 16
        %v646 = vpop.permute.xlu0 %645
        %647 = vrot.lane.b32.xlu0 %v626, 16
        %v648 = vpop.permute.xlu0 %647
        %649 = vrot.lane.b32.xlu0 %v627, 16
        %v650 = vpop.permute.xlu0 %649
        %651 = vrot.lane.b32.xlu0 %v628, 16
        %v652 = vpop.permute.xlu0 %651
        %661 = vst.msk [vmem:[#allocation2] sm:$0xff] %vm296, %v638
        %662 = vst.msk [vmem:[#allocation2 + $0x8] sm:$0xff] %vm296, %v640
        %663 = vst.msk [vmem:[#allocation2 + $0x10] sm:$0xff] %vm296, %v642
        %664 = vst.msk [vmem:[#allocation2 + $0x18] sm:$0xff] %vm296, %v644
        %665 = vst.msk [vmem:[#allocation2 + $0x20] sm:$0xff] %vm296, %v646
        %666 = vst.msk [vmem:[#allocation2 + $0x28] sm:$0xff] %vm296, %v648
        %667 = vst.msk [vmem:[#allocation2 + $0x30] sm:$0xff] %vm296, %v650
        %668 = vst.msk [vmem:[#allocation2 + $0x38] sm:$0xff] %vm296, %v652
        %v669 = vld [vmem:[%s255 + $0x2] sm:$0xff]
        %v670 = vld [vmem:[%s255 + $0x12] sm:$0xff]
        %v671 = vld [vmem:[%s255 + $0x22] sm:$0xff]
        %v672 = vld [vmem:[%s255 + $0x32] sm:$0xff]
        %v673 = vld [vmem:[%s255 + $0x42] sm:$0xff]
        %v674 = vld [vmem:[%s255 + $0x52] sm:$0xff]
        %v675 = vld [vmem:[%s255 + $0x62] sm:$0xff]
        %v676 = vld [vmem:[%s255 + $0x72] sm:$0xff]
        %685 = vrot.lane.b32.xlu0 %v669, 24
        %v686 = vpop.permute.xlu0 %685
        %687 = vrot.lane.b32.xlu0 %v670, 24
        %v688 = vpop.permute.xlu0 %687
        %689 = vrot.lane.b32.xlu0 %v671, 24
        %v690 = vpop.permute.xlu0 %689
        %691 = vrot.lane.b32.xlu0 %v672, 24
        %v692 = vpop.permute.xlu0 %691
        %693 = vrot.lane.b32.xlu0 %v673, 24
        %v694 = vpop.permute.xlu0 %693
        %695 = vrot.lane.b32.xlu0 %v674, 24
        %v696 = vpop.permute.xlu0 %695
        %697 = vrot.lane.b32.xlu0 %v675, 24
        %v698 = vpop.permute.xlu0 %697
        %699 = vrot.lane.b32.xlu0 %v676, 24
        %v700 = vpop.permute.xlu0 %699
        %709 = vst.msk [vmem:[#allocation2] sm:$0xff] %vm345, %v686
        %710 = vst.msk [vmem:[#allocation2 + $0x8] sm:$0xff] %vm345, %v688
        %711 = vst.msk [vmem:[#allocation2 + $0x10] sm:$0xff] %vm345, %v690
        %712 = vst.msk [vmem:[#allocation2 + $0x18] sm:$0xff] %vm345, %v692
        %713 = vst.msk [vmem:[#allocation2 + $0x20] sm:$0xff] %vm345, %v694
        %714 = vst.msk [vmem:[#allocation2 + $0x28] sm:$0xff] %vm345, %v696
        %715 = vst.msk [vmem:[#allocation2 + $0x30] sm:$0xff] %vm345, %v698
        %716 = vst.msk [vmem:[#allocation2 + $0x38] sm:$0xff] %vm345, %v700
        %v717 = vld [vmem:[#allocation2] sm:$0xff]
        %v718 = vld [vmem:[#allocation2 + $0x8] sm:$0xff]
        %v719 = vld [vmem:[#allocation2 + $0x10] sm:$0xff]
        %v720 = vld [vmem:[#allocation2 + $0x18] sm:$0xff]
        %v721 = vld [vmem:[#allocation2 + $0x20] sm:$0xff]
        %v722 = vld [vmem:[#allocation2 + $0x28] sm:$0xff]
        %v723 = vld [vmem:[#allocation2 + $0x30] sm:$0xff]
        %v724 = vld [vmem:[#allocation2 + $0x38] sm:$0xff]
        %s725 = scalar_lea.vmem %s1, 32
        %v726 = vld [vmem:[%s725] sm:$0xff]
        %v727 = vld [vmem:[%s725 + $0x8] sm:$0xff]
        %v728 = vld [vmem:[%s725 + $0x10] sm:$0xff]
        %v729 = vld [vmem:[%s725 + $0x18] sm:$0xff]
        %v731 = vsel %vm366, %v717, 0
        %v734 = vsel %vm366, %v718, 0
        %v737 = vsel %vm366, %v719, 0
        %v740 = vsel %vm366, %v720, 0
        %v743 = vsel %vm366, %v721, 0
        %v746 = vsel %vm366, %v722, 0
        %v749 = vsel %vm366, %v723, 0
        %v752 = vsel %vm366, %v724, 0
        %754 = vmatprep.subr.mxu0 0.0
        %755 = vmatpush1.msra.mxu0 %v726
        %756 = vmatprep.subr.mxu0 0.0
        %757 = vmatpush1.msra.mxu0 %v727
        %758 = vmatprep.subr.mxu0 0.0
        %759 = vmatpush1.msra.mxu0 %v728
        %760 = vmatprep.subr.mxu0 0.0
        %761 = vmatpush1.msra.mxu0 %v729
        %762 = vmatprep.subr.mxu0 0.0
        %763 = vmatpush1.msra.mxu0 0.0
        %764 = vmatprep.subr.mxu0 0.0
        %765 = vmatpush1.msra.mxu0 0.0
        %766 = vmatprep.subr.mxu0 0.0
        %767 = vmatpush1.msra.mxu0 0.0
        %768 = vmatprep.subr.mxu0 0.0
        %769 = vmatpush1.msra.mxu0 0.0
        %770 = vmatprep.subr.mxu0 0.0
        %771 = vmatpush1.msra.mxu0 0.0
        %772 = vmatprep.subr.mxu0 0.0
        %773 = vmatpush1.msra.mxu0 0.0
        %774 = vmatprep.subr.mxu0 0.0
        %775 = vmatpush1.msra.mxu0 0.0
        %776 = vmatprep.subr.mxu0 0.0
        %777 = vmatpush1.msra.mxu0 0.0
        %778 = vmatprep.subr.mxu0 0.0
        %779 = vmatpush1.msra.mxu0 0.0
        %780 = vmatprep.subr.mxu0 0.0
        %781 = vmatpush1.msra.mxu0 0.0
        %782 = vmatprep.subr.mxu0 0.0
        %783 = vmatpush1.msra.mxu0 0.0
        %784 = vmatprep.subr.mxu0 0.0
        %785 = vmatpush1.msra.mxu0 0.0
        %786 = vmatprep.subr.mxu0 0.0
        %787 = vmatpush1.msra.mxu0 0.0
        %788 = vmatprep.subr.mxu0 0.0
        %789 = vmatpush1.msra.mxu0 0.0
        %790 = vmatprep.subr.mxu0 0.0
        %791 = vmatpush1.msra.mxu0 0.0
        %792 = vmatprep.subr.mxu0 0.0
        %793 = vmatpush1.msra.mxu0 0.0
        %794 = vmatprep.subr.mxu0 0.0
        %795 = vmatpush1.msra.mxu0 0.0
        %796 = vmatprep.subr.mxu0 0.0
        %797 = vmatpush1.msra.mxu0 0.0
        %798 = vmatprep.subr.mxu0 0.0
        %799 = vmatpush1.msra.mxu0 0.0
        %800 = vmatprep.subr.mxu0 0.0
        %801 = vmatpush1.msra.mxu0 0.0
        %802 = vmatprep.subr.mxu0 0.0
        %803 = vmatpush1.msra.mxu0 0.0
        %804 = vmatprep.subr.mxu0 0.0
        %805 = vmatpush1.msra.mxu0 0.0
        %806 = vmatprep.subr.mxu0 0.0
        %807 = vmatpush1.msra.mxu0 0.0
        %808 = vmatprep.subr.mxu0 0.0
        %809 = vmatpush1.msra.mxu0 0.0
        %810 = vmatprep.subr.mxu0 0.0
        %811 = vmatpush1.msra.mxu0 0.0
        %812 = vmatprep.subr.mxu0 0.0
        %813 = vmatpush1.msra.mxu0 0.0
        %814 = vmatprep.subr.mxu0 0.0
        %815 = vmatpush1.msra.mxu0 0.0
        %816 = vmatprep.subr.mxu0 0.0
        %817 = vmatpush1.msra.mxu0 0.0
        %818 = vmatprep.mubr.f32.mxu0 0.0
        %819 = vmatmul.mubr.f32.gmra.mrb[0].mxu0 %v731
        %v820 = vpop.f32.mrb[0].mxu0
        %v821 = vadd.f32 0.0, %v820
        %v822 = vpop.f32.mrb[0].mxu0
        %823 = vmatprep.mubr.f32.mxu0 0.0
        %824 = vmatmul.mubr.f32.gmra.mrb[0].mxu0 %v734
        %v825 = vpop.f32.mrb[0].mxu0
        %v826 = vadd.f32 0.0, %v825
        %v827 = vpop.f32.mrb[0].mxu0
        %828 = vmatprep.mubr.f32.mxu0 0.0
        %829 = vmatmul.mubr.f32.gmra.mrb[0].mxu0 %v737
        %v830 = vpop.f32.mrb[0].mxu0
        %v831 = vadd.f32 0.0, %v830
        %v832 = vpop.f32.mrb[0].mxu0
        %833 = vmatprep.mubr.f32.mxu0 0.0
        %834 = vmatmul.mubr.f32.gmra.mrb[0].mxu0 %v740
        %v835 = vpop.f32.mrb[0].mxu0
        %v836 = vadd.f32 0.0, %v835
        %v837 = vpop.f32.mrb[0].mxu0
        %838 = vmatprep.mubr.f32.mxu0 0.0
        %839 = vmatmul.mubr.f32.gmra.mrb[0].mxu0 %v743
        %v840 = vpop.f32.mrb[0].mxu0
        %v841 = vadd.f32 0.0, %v840
        %v842 = vpop.f32.mrb[0].mxu0
        %843 = vmatprep.mubr.f32.mxu0 0.0
        %844 = vmatmul.mubr.f32.gmra.mrb[0].mxu0 %v746
        %v845 = vpop.f32.mrb[0].mxu0
        %v846 = vadd.f32 0.0, %v845
        %v847 = vpop.f32.mrb[0].mxu0
        %848 = vmatprep.mubr.f32.mxu0 0.0
        %849 = vmatmul.mubr.f32.gmra.mrb[0].mxu0 %v749
        %v850 = vpop.f32.mrb[0].mxu0
        %v851 = vadd.f32 0.0, %v850
        %v852 = vpop.f32.mrb[0].mxu0
        %853 = vmatprep.mubr.f32.mxu0 0.0
        %854 = vmatmul.mubr.f32.gmra.mrb[0].mxu0 %v752
        %v855 = vpop.f32.mrb[0].mxu0
        %v856 = vadd.f32 0.0, %v855
        %v857 = vpop.f32.mrb[0].mxu0
        %858 = vdwg.mxu0
        %867 = vrot.lane.b32.xlu0 %v821, 4
        %v868 = vpop.permute.xlu0 %867
        %869 = vrot.lane.b32.xlu0 %v826, 4
        %v870 = vpop.permute.xlu0 %869
        %871 = vrot.lane.b32.xlu0 %v831, 4
        %v872 = vpop.permute.xlu0 %871
        %873 = vrot.lane.b32.xlu0 %v836, 4
        %v874 = vpop.permute.xlu0 %873
        %875 = vrot.lane.b32.xlu0 %v841, 4
        %v876 = vpop.permute.xlu0 %875
        %877 = vrot.lane.b32.xlu0 %v846, 4
        %v878 = vpop.permute.xlu0 %877
        %879 = vrot.lane.b32.xlu0 %v851, 4
        %v880 = vpop.permute.xlu0 %879
        %881 = vrot.lane.b32.xlu0 %v856, 4
        %v882 = vpop.permute.xlu0 %881
        %vm891 = vcmask 64544
        %892 = vst.msk [vmem:[#allocation3] sm:$0xff] %vm891, %v868
        %893 = vst.msk [vmem:[#allocation3 + $0x8] sm:$0xff] %vm891, %v870
        %894 = vst.msk [vmem:[#allocation3 + $0x10] sm:$0xff] %vm891, %v872
        %895 = vst.msk [vmem:[#allocation3 + $0x18] sm:$0xff] %vm891, %v874
        %896 = vst.msk [vmem:[#allocation3 + $0x20] sm:$0xff] %vm891, %v876
        %897 = vst.msk [vmem:[#allocation3 + $0x28] sm:$0xff] %vm891, %v878
        %898 = vst.msk [vmem:[#allocation3 + $0x30] sm:$0xff] %vm891, %v880
        %899 = vst.msk [vmem:[#allocation3 + $0x38] sm:$0xff] %vm891, %v882
        %v900 = vsel %vm496, %v821, 0.0
        %v901 = vsel %vm496, %v826, 0.0
        %v902 = vadd.f32 %v900, %v901
        %v903 = vsel %vm496, %v831, 0.0
        %v904 = vadd.f32 %v902, %v903
        %v905 = vsel %vm496, %v836, 0.0
        %v906 = vadd.f32 %v904, %v905
        %v907 = vsel %vm496, %v841, 0.0
        %v908 = vadd.f32 %v906, %v907
        %v909 = vsel %vm496, %v846, 0.0
        %v910 = vadd.f32 %v908, %v909
        %v911 = vsel %vm496, %v851, 0.0
        %v912 = vadd.f32 %v910, %v911
        %v913 = vsel %vm496, %v856, 0.0
        %v914 = vadd.f32 %v912, %v913
        %v915 = vrot.slane %v914, 4
        %v916 = vadd.f32 %v914, %v915
        %v917 = vrot.slane %v916, 2
        %v918 = vadd.f32 %v916, %v917
        %v919 = vrot.slane %v918, 1
        %v920 = vadd.f32 %v918, %v919
        %v921 = vadd.f32 %v526, %v920
        %v922 = vmul.f32 %v821, %v821
        %v923 = vmul.f32 %v826, %v826
        %v924 = vmul.f32 %v831, %v831
        %v925 = vmul.f32 %v836, %v836
        %v926 = vmul.f32 %v841, %v841
        %v927 = vmul.f32 %v846, %v846
        %v928 = vmul.f32 %v851, %v851
        %v929 = vmul.f32 %v856, %v856
        %v930 = vsel %vm496, %v922, 0.0
        %v931 = vsel %vm496, %v923, 0.0
        %v932 = vadd.f32 %v930, %v931
        %v933 = vsel %vm496, %v924, 0.0
        %v934 = vadd.f32 %v932, %v933
        %v935 = vsel %vm496, %v925, 0.0
        %v936 = vadd.f32 %v934, %v935
        %v937 = vsel %vm496, %v926, 0.0
        %v938 = vadd.f32 %v936, %v937
        %v939 = vsel %vm496, %v927, 0.0
        %v940 = vadd.f32 %v938, %v939
        %v941 = vsel %vm496, %v928, 0.0
        %v942 = vadd.f32 %v940, %v941
        %v943 = vsel %vm496, %v929, 0.0
        %v944 = vadd.f32 %v942, %v943
        %v945 = vrot.slane %v944, 4
        %v946 = vadd.f32 %v944, %v945
        %v947 = vrot.slane %v946, 2
        %v948 = vadd.f32 %v946, %v947
        %v949 = vrot.slane %v948, 1
        %v950 = vadd.f32 %v948, %v949
        %v951 = vadd.f32 %v556, %v950
        %v952 = vld [vmem:[%s255] sm:$0xff]
        %v953 = vld [vmem:[%s255 + $0x10] sm:$0xff]
        %v954 = vld [vmem:[%s255 + $0x20] sm:$0xff]
        %v955 = vld [vmem:[%s255 + $0x30] sm:$0xff]
        %v956 = vld [vmem:[%s255 + $0x40] sm:$0xff]
        %v957 = vld [vmem:[%s255 + $0x50] sm:$0xff]
        %v958 = vld [vmem:[%s255 + $0x60] sm:$0xff]
        %v959 = vld [vmem:[%s255 + $0x70] sm:$0xff]
        %960 = vst.msk [vmem:[#allocation2] sm:$0xff] %vm197, %v952
        %961 = vst.msk [vmem:[#allocation2 + $0x8] sm:$0xff] %vm197, %v953
        %962 = vst.msk [vmem:[#allocation2 + $0x10] sm:$0xff] %vm197, %v954
        %963 = vst.msk [vmem:[#allocation2 + $0x18] sm:$0xff] %vm197, %v955
        %964 = vst.msk [vmem:[#allocation2 + $0x20] sm:$0xff] %vm197, %v956
        %965 = vst.msk [vmem:[#allocation2 + $0x28] sm:$0xff] %vm197, %v957
        %966 = vst.msk [vmem:[#allocation2 + $0x30] sm:$0xff] %vm197, %v958
        %967 = vst.msk [vmem:[#allocation2 + $0x38] sm:$0xff] %vm197, %v959
        %v968 = vld [vmem:[%s255 + $0x1] sm:$0xff]
        %v969 = vld [vmem:[%s255 + $0x11] sm:$0xff]
        %v970 = vld [vmem:[%s255 + $0x21] sm:$0xff]
        %v971 = vld [vmem:[%s255 + $0x31] sm:$0xff]
        %v972 = vld [vmem:[%s255 + $0x41] sm:$0xff]
        %v973 = vld [vmem:[%s255 + $0x51] sm:$0xff]
        %v974 = vld [vmem:[%s255 + $0x61] sm:$0xff]
        %v975 = vld [vmem:[%s255 + $0x71] sm:$0xff]
        %984 = vrot.lane.b32.xlu0 %v968, 8
        %v985 = vpop.permute.xlu0 %984
        %986 = vrot.lane.b32.xlu0 %v969, 8
        %v987 = vpop.permute.xlu0 %986
        %988 = vrot.lane.b32.xlu0 %v970, 8
        %v989 = vpop.permute.xlu0 %988
        %990 = vrot.lane.b32.xlu0 %v971, 8
        %v991 = vpop.permute.xlu0 %990
        %992 = vrot.lane.b32.xlu0 %v972, 8
        %v993 = vpop.permute.xlu0 %992
        %994 = vrot.lane.b32.xlu0 %v973, 8
        %v995 = vpop.permute.xlu0 %994
        %996 = vrot.lane.b32.xlu0 %v974, 8
        %v997 = vpop.permute.xlu0 %996
        %998 = vrot.lane.b32.xlu0 %v975, 8
        %v999 = vpop.permute.xlu0 %998
        %1008 = vst.msk [vmem:[#allocation2] sm:$0xff] %vm246, %v985
        %1009 = vst.msk [vmem:[#allocation2 + $0x8] sm:$0xff] %vm246, %v987
        %1010 = vst.msk [vmem:[#allocation2 + $0x10] sm:$0xff] %vm246, %v989
        %1011 = vst.msk [vmem:[#allocation2 + $0x18] sm:$0xff] %vm246, %v991
        %1012 = vst.msk [vmem:[#allocation2 + $0x20] sm:$0xff] %vm246, %v993
        %1013 = vst.msk [vmem:[#allocation2 + $0x28] sm:$0xff] %vm246, %v995
        %1014 = vst.msk [vmem:[#allocation2 + $0x30] sm:$0xff] %vm246, %v997
        %1015 = vst.msk [vmem:[#allocation2 + $0x38] sm:$0xff] %vm246, %v999
        %s1016 = scalar_lea.vmem %s183, 32
        %v1017 = vld [vmem:[%s1016] sm:$0xff]
        %v1018 = vld [vmem:[%s1016 + $0x10] sm:$0xff]
        %v1019 = vld [vmem:[%s1016 + $0x20] sm:$0xff]
        %v1020 = vld [vmem:[%s1016 + $0x30] sm:$0xff]
        %v1021 = vld [vmem:[%s1016 + $0x40] sm:$0xff]
        %v1022 = vld [vmem:[%s1016 + $0x50] sm:$0xff]
        %v1023 = vld [vmem:[%s1016 + $0x60] sm:$0xff]
        %v1024 = vld [vmem:[%s1016 + $0x70] sm:$0xff]
        %1033 = vrot.lane.b32.xlu0 %v1017, 16
        %v1034 = vpop.permute.xlu0 %1033
        %1035 = vrot.lane.b32.xlu0 %v1018, 16
        %v1036 = vpop.permute.xlu0 %1035
        %1037 = vrot.lane.b32.xlu0 %v1019, 16
        %v1038 = vpop.permute.xlu0 %1037
        %1039 = vrot.lane.b32.xlu0 %v1020, 16
        %v1040 = vpop.permute.xlu0 %1039
        %1041 = vrot.lane.b32.xlu0 %v1021, 16
        %v1042 = vpop.permute.xlu0 %1041
        %1043 = vrot.lane.b32.xlu0 %v1022, 16
        %v1044 = vpop.permute.xlu0 %1043
        %1045 = vrot.lane.b32.xlu0 %v1023, 16
        %v1046 = vpop.permute.xlu0 %1045
        %1047 = vrot.lane.b32.xlu0 %v1024, 16
        %v1048 = vpop.permute.xlu0 %1047
        %1057 = vst.msk [vmem:[#allocation2] sm:$0xff] %vm296, %v1034
        %1058 = vst.msk [vmem:[#allocation2 + $0x8] sm:$0xff] %vm296, %v1036
        %1059 = vst.msk [vmem:[#allocation2 + $0x10] sm:$0xff] %vm296, %v1038
        %1060 = vst.msk [vmem:[#allocation2 + $0x18] sm:$0xff] %vm296, %v1040
        %1061 = vst.msk [vmem:[#allocation2 + $0x20] sm:$0xff] %vm296, %v1042
        %1062 = vst.msk [vmem:[#allocation2 + $0x28] sm:$0xff] %vm296, %v1044
        %1063 = vst.msk [vmem:[#allocation2 + $0x30] sm:$0xff] %vm296, %v1046
        %1064 = vst.msk [vmem:[#allocation2 + $0x38] sm:$0xff] %vm296, %v1048
        %v1065 = vld [vmem:[%s1016 + $0x1] sm:$0xff]
        %v1066 = vld [vmem:[%s1016 + $0x11] sm:$0xff]
        %v1067 = vld [vmem:[%s1016 + $0x21] sm:$0xff]
        %v1068 = vld [vmem:[%s1016 + $0x31] sm:$0xff]
        %v1069 = vld [vmem:[%s1016 + $0x41] sm:$0xff]
        %v1070 = vld [vmem:[%s1016 + $0x51] sm:$0xff]
        %v1071 = vld [vmem:[%s1016 + $0x61] sm:$0xff]
        %v1072 = vld [vmem:[%s1016 + $0x71] sm:$0xff]
        %1081 = vrot.lane.b32.xlu0 %v1065, 24
        %v1082 = vpop.permute.xlu0 %1081
        %1083 = vrot.lane.b32.xlu0 %v1066, 24
        %v1084 = vpop.permute.xlu0 %1083
        %1085 = vrot.lane.b32.xlu0 %v1067, 24
        %v1086 = vpop.permute.xlu0 %1085
        %1087 = vrot.lane.b32.xlu0 %v1068, 24
        %v1088 = vpop.permute.xlu0 %1087
        %1089 = vrot.lane.b32.xlu0 %v1069, 24
        %v1090 = vpop.permute.xlu0 %1089
        %1091 = vrot.lane.b32.xlu0 %v1070, 24
        %v1092 = vpop.permute.xlu0 %1091
        %1093 = vrot.lane.b32.xlu0 %v1071, 24
        %v1094 = vpop.permute.xlu0 %1093
        %1095 = vrot.lane.b32.xlu0 %v1072, 24
        %v1096 = vpop.permute.xlu0 %1095
        %1105 = vst.msk [vmem:[#allocation2] sm:$0xff] %vm345, %v1082
        %1106 = vst.msk [vmem:[#allocation2 + $0x8] sm:$0xff] %vm345, %v1084
        %1107 = vst.msk [vmem:[#allocation2 + $0x10] sm:$0xff] %vm345, %v1086
        %1108 = vst.msk [vmem:[#allocation2 + $0x18] sm:$0xff] %vm345, %v1088
        %1109 = vst.msk [vmem:[#allocation2 + $0x20] sm:$0xff] %vm345, %v1090
        %1110 = vst.msk [vmem:[#allocation2 + $0x28] sm:$0xff] %vm345, %v1092
        %1111 = vst.msk [vmem:[#allocation2 + $0x30] sm:$0xff] %vm345, %v1094
        %1112 = vst.msk [vmem:[#allocation2 + $0x38] sm:$0xff] %vm345, %v1096
        %v1113 = vld [vmem:[#allocation2] sm:$0xff]
        %v1114 = vld [vmem:[#allocation2 + $0x8] sm:$0xff]
        %v1115 = vld [vmem:[#allocation2 + $0x10] sm:$0xff]
        %v1116 = vld [vmem:[#allocation2 + $0x18] sm:$0xff]
        %v1117 = vld [vmem:[#allocation2 + $0x20] sm:$0xff]
        %v1118 = vld [vmem:[#allocation2 + $0x28] sm:$0xff]
        %v1119 = vld [vmem:[#allocation2 + $0x30] sm:$0xff]
        %v1120 = vld [vmem:[#allocation2 + $0x38] sm:$0xff]
        %s1121 = scalar_lea.vmem %s1, 64
        %v1122 = vld [vmem:[%s1121] sm:$0xff]
        %v1123 = vld [vmem:[%s1121 + $0x8] sm:$0xff]
        %v1124 = vld [vmem:[%s1121 + $0x10] sm:$0xff]
        %v1125 = vld [vmem:[%s1121 + $0x18] sm:$0xff]
        %v1127 = vsel %vm366, %v1113, 0
        %v1130 = vsel %vm366, %v1114, 0
        %v1133 = vsel %vm366, %v1115, 0
        %v1136 = vsel %vm366, %v1116, 0
        %v1139 = vsel %vm366, %v1117, 0
        %v1142 = vsel %vm366, %v1118, 0
        %v1145 = vsel %vm366, %v1119, 0
        %v1148 = vsel %vm366, %v1120, 0
        %1150 = vmatprep.subr.mxu0 0.0
        %1151 = vmatpush1.msra.mxu0 %v1122
        %1152 = vmatprep.subr.mxu0 0.0
        %1153 = vmatpush1.msra.mxu0 %v1123
        %1154 = vmatprep.subr.mxu0 0.0
        %1155 = vmatpush1.msra.mxu0 %v1124
        %1156 = vmatprep.subr.mxu0 0.0
        %1157 = vmatpush1.msra.mxu0 %v1125
        %1158 = vmatprep.subr.mxu0 0.0
        %1159 = vmatpush1.msra.mxu0 0.0
        %1160 = vmatprep.subr.mxu0 0.0
        %1161 = vmatpush1.msra.mxu0 0.0
        %1162 = vmatprep.subr.mxu0 0.0
        %1163 = vmatpush1.msra.mxu0 0.0
        %1164 = vmatprep.subr.mxu0 0.0
        %1165 = vmatpush1.msra.mxu0 0.0
        %1166 = vmatprep.subr.mxu0 0.0
        %1167 = vmatpush1.msra.mxu0 0.0
        %1168 = vmatprep.subr.mxu0 0.0
        %1169 = vmatpush1.msra.mxu0 0.0
        %1170 = vmatprep.subr.mxu0 0.0
        %1171 = vmatpush1.msra.mxu0 0.0
        %1172 = vmatprep.subr.mxu0 0.0
        %1173 = vmatpush1.msra.mxu0 0.0
        %1174 = vmatprep.subr.mxu0 0.0
        %1175 = vmatpush1.msra.mxu0 0.0
        %1176 = vmatprep.subr.mxu0 0.0
        %1177 = vmatpush1.msra.mxu0 0.0
        %1178 = vmatprep.subr.mxu0 0.0
        %1179 = vmatpush1.msra.mxu0 0.0
        %1180 = vmatprep.subr.mxu0 0.0
        %1181 = vmatpush1.msra.mxu0 0.0
        %1182 = vmatprep.subr.mxu0 0.0
        %1183 = vmatpush1.msra.mxu0 0.0
        %1184 = vmatprep.subr.mxu0 0.0
        %1185 = vmatpush1.msra.mxu0 0.0
        %1186 = vmatprep.subr.mxu0 0.0
        %1187 = vmatpush1.msra.mxu0 0.0
        %1188 = vmatprep.subr.mxu0 0.0
        %1189 = vmatpush1.msra.mxu0 0.0
        %1190 = vmatprep.subr.mxu0 0.0
        %1191 = vmatpush1.msra.mxu0 0.0
        %1192 = vmatprep.subr.mxu0 0.0
        %1193 = vmatpush1.msra.mxu0 0.0
        %1194 = vmatprep.subr.mxu0 0.0
        %1195 = vmatpush1.msra.mxu0 0.0
        %1196 = vmatprep.subr.mxu0 0.0
        %1197 = vmatpush1.msra.mxu0 0.0
        %1198 = vmatprep.subr.mxu0 0.0
        %1199 = vmatpush1.msra.mxu0 0.0
        %1200 = vmatprep.subr.mxu0 0.0
        %1201 = vmatpush1.msra.mxu0 0.0
        %1202 = vmatprep.subr.mxu0 0.0
        %1203 = vmatpush1.msra.mxu0 0.0
        %1204 = vmatprep.subr.mxu0 0.0
        %1205 = vmatpush1.msra.mxu0 0.0
        %1206 = vmatprep.subr.mxu0 0.0
        %1207 = vmatpush1.msra.mxu0 0.0
        %1208 = vmatprep.subr.mxu0 0.0
        %1209 = vmatpush1.msra.mxu0 0.0
        %1210 = vmatprep.subr.mxu0 0.0
        %1211 = vmatpush1.msra.mxu0 0.0
        %1212 = vmatprep.subr.mxu0 0.0
        %1213 = vmatpush1.msra.mxu0 0.0
        %1214 = vmatprep.mubr.f32.mxu0 0.0
        %1215 = vmatmul.mubr.f32.gmra.mrb[0].mxu0 %v1127
        %v1216 = vpop.f32.mrb[0].mxu0
        %v1217 = vadd.f32 0.0, %v1216
        %v1218 = vpop.f32.mrb[0].mxu0
        %1219 = vmatprep.mubr.f32.mxu0 0.0
        %1220 = vmatmul.mubr.f32.gmra.mrb[0].mxu0 %v1130
        %v1221 = vpop.f32.mrb[0].mxu0
        %v1222 = vadd.f32 0.0, %v1221
        %v1223 = vpop.f32.mrb[0].mxu0
        %1224 = vmatprep.mubr.f32.mxu0 0.0
        %1225 = vmatmul.mubr.f32.gmra.mrb[0].mxu0 %v1133
        %v1226 = vpop.f32.mrb[0].mxu0
        %v1227 = vadd.f32 0.0, %v1226
        %v1228 = vpop.f32.mrb[0].mxu0
        %1229 = vmatprep.mubr.f32.mxu0 0.0
        %1230 = vmatmul.mubr.f32.gmra.mrb[0].mxu0 %v1136
        %v1231 = vpop.f32.mrb[0].mxu0
        %v1232 = vadd.f32 0.0, %v1231
        %v1233 = vpop.f32.mrb[0].mxu0
        %1234 = vmatprep.mubr.f32.mxu0 0.0
        %1235 = vmatmul.mubr.f32.gmra.mrb[0].mxu0 %v1139
        %v1236 = vpop.f32.mrb[0].mxu0
        %v1237 = vadd.f32 0.0, %v1236
        %v1238 = vpop.f32.mrb[0].mxu0
        %1239 = vmatprep.mubr.f32.mxu0 0.0
        %1240 = vmatmul.mubr.f32.gmra.mrb[0].mxu0 %v1142
        %v1241 = vpop.f32.mrb[0].mxu0
        %v1242 = vadd.f32 0.0, %v1241
        %v1243 = vpop.f32.mrb[0].mxu0
        %1244 = vmatprep.mubr.f32.mxu0 0.0
        %1245 = vmatmul.mubr.f32.gmra.mrb[0].mxu0 %v1145
        %v1246 = vpop.f32.mrb[0].mxu0
        %v1247 = vadd.f32 0.0, %v1246
        %v1248 = vpop.f32.mrb[0].mxu0
        %1249 = vmatprep.mubr.f32.mxu0 0.0
        %1250 = vmatmul.mubr.f32.gmra.mrb[0].mxu0 %v1148
        %v1251 = vpop.f32.mrb[0].mxu0
        %v1252 = vadd.f32 0.0, %v1251
        %v1253 = vpop.f32.mrb[0].mxu0
        %1254 = vdwg.mxu0
        %1263 = vrot.lane.b32.xlu0 %v1217, 8
        %v1264 = vpop.permute.xlu0 %1263
        %1265 = vrot.lane.b32.xlu0 %v1222, 8
        %v1266 = vpop.permute.xlu0 %1265
        %1267 = vrot.lane.b32.xlu0 %v1227, 8
        %v1268 = vpop.permute.xlu0 %1267
        %1269 = vrot.lane.b32.xlu0 %v1232, 8
        %v1270 = vpop.permute.xlu0 %1269
        %1271 = vrot.lane.b32.xlu0 %v1237, 8
        %v1272 = vpop.permute.xlu0 %1271
        %1273 = vrot.lane.b32.xlu0 %v1242, 8
        %v1274 = vpop.permute.xlu0 %1273
        %1275 = vrot.lane.b32.xlu0 %v1247, 8
        %v1276 = vpop.permute.xlu0 %1275
        %1277 = vrot.lane.b32.xlu0 %v1252, 8
        %v1278 = vpop.permute.xlu0 %1277
        %vm1287 = vcmask 97344
        %1288 = vst.msk [vmem:[#allocation3] sm:$0xff] %vm1287, %v1264
        %1289 = vst.msk [vmem:[#allocation3 + $0x8] sm:$0xff] %vm1287, %v1266
        %1290 = vst.msk [vmem:[#allocation3 + $0x10] sm:$0xff] %vm1287, %v1268
        %1291 = vst.msk [vmem:[#allocation3 + $0x18] sm:$0xff] %vm1287, %v1270
        %1292 = vst.msk [vmem:[#allocation3 + $0x20] sm:$0xff] %vm1287, %v1272
        %1293 = vst.msk [vmem:[#allocation3 + $0x28] sm:$0xff] %vm1287, %v1274
        %1294 = vst.msk [vmem:[#allocation3 + $0x30] sm:$0xff] %vm1287, %v1276
        %1295 = vst.msk [vmem:[#allocation3 + $0x38] sm:$0xff] %vm1287, %v1278
        %v1296 = vsel %vm496, %v1217, 0.0
        %v1297 = vsel %vm496, %v1222, 0.0
        %v1298 = vadd.f32 %v1296, %v1297
        %v1299 = vsel %vm496, %v1227, 0.0
        %v1300 = vadd.f32 %v1298, %v1299
        %v1301 = vsel %vm496, %v1232, 0.0
        %v1302 = vadd.f32 %v1300, %v1301
        %v1303 = vsel %vm496, %v1237, 0.0
        %v1304 = vadd.f32 %v1302, %v1303
        %v1305 = vsel %vm496, %v1242, 0.0
        %v1306 = vadd.f32 %v1304, %v1305
        %v1307 = vsel %vm496, %v1247, 0.0
        %v1308 = vadd.f32 %v1306, %v1307
        %v1309 = vsel %vm496, %v1252, 0.0
        %v1310 = vadd.f32 %v1308, %v1309
        %v1311 = vrot.slane %v1310, 4
        %v1312 = vadd.f32 %v1310, %v1311
        %v1313 = vrot.slane %v1312, 2
        %v1314 = vadd.f32 %v1312, %v1313
        %v1315 = vrot.slane %v1314, 1
        %v1316 = vadd.f32 %v1314, %v1315
        %v1317 = vadd.f32 %v921, %v1316
        %v1318 = vmul.f32 %v1217, %v1217
        %v1319 = vmul.f32 %v1222, %v1222
        %v1320 = vmul.f32 %v1227, %v1227
        %v1321 = vmul.f32 %v1232, %v1232
        %v1322 = vmul.f32 %v1237, %v1237
        %v1323 = vmul.f32 %v1242, %v1242
        %v1324 = vmul.f32 %v1247, %v1247
        %v1325 = vmul.f32 %v1252, %v1252
        %v1326 = vsel %vm496, %v1318, 0.0
        %v1327 = vsel %vm496, %v1319, 0.0
        %v1328 = vadd.f32 %v1326, %v1327
        %v1329 = vsel %vm496, %v1320, 0.0
        %v1330 = vadd.f32 %v1328, %v1329
        %v1331 = vsel %vm496, %v1321, 0.0
        %v1332 = vadd.f32 %v1330, %v1331
        %v1333 = vsel %vm496, %v1322, 0.0
        %v1334 = vadd.f32 %v1332, %v1333
        %v1335 = vsel %vm496, %v1323, 0.0
        %v1336 = vadd.f32 %v1334, %v1335
        %v1337 = vsel %vm496, %v1324, 0.0
        %v1338 = vadd.f32 %v1336, %v1337
        %v1339 = vsel %vm496, %v1325, 0.0
        %v1340 = vadd.f32 %v1338, %v1339
        %v1341 = vrot.slane %v1340, 4
        %v1342 = vadd.f32 %v1340, %v1341
        %v1343 = vrot.slane %v1342, 2
        %v1344 = vadd.f32 %v1342, %v1343
        %v1345 = vrot.slane %v1344, 1
        %v1346 = vadd.f32 %v1344, %v1345
        %v1347 = vadd.f32 %v951, %v1346
        %v1348 = vld [vmem:[%s255 + $0x1] sm:$0xff]
        %v1349 = vld [vmem:[%s255 + $0x11] sm:$0xff]
        %v1350 = vld [vmem:[%s255 + $0x21] sm:$0xff]
        %v1351 = vld [vmem:[%s255 + $0x31] sm:$0xff]
        %v1352 = vld [vmem:[%s255 + $0x41] sm:$0xff]
        %v1353 = vld [vmem:[%s255 + $0x51] sm:$0xff]
        %v1354 = vld [vmem:[%s255 + $0x61] sm:$0xff]
        %v1355 = vld [vmem:[%s255 + $0x71] sm:$0xff]
        %1356 = vst.msk [vmem:[#allocation2] sm:$0xff] %vm197, %v1348
        %1357 = vst.msk [vmem:[#allocation2 + $0x8] sm:$0xff] %vm197, %v1349
        %1358 = vst.msk [vmem:[#allocation2 + $0x10] sm:$0xff] %vm197, %v1350
        %1359 = vst.msk [vmem:[#allocation2 + $0x18] sm:$0xff] %vm197, %v1351
        %1360 = vst.msk [vmem:[#allocation2 + $0x20] sm:$0xff] %vm197, %v1352
        %1361 = vst.msk [vmem:[#allocation2 + $0x28] sm:$0xff] %vm197, %v1353
        %1362 = vst.msk [vmem:[#allocation2 + $0x30] sm:$0xff] %vm197, %v1354
        %1363 = vst.msk [vmem:[#allocation2 + $0x38] sm:$0xff] %vm197, %v1355
        %v1364 = vld [vmem:[%s255 + $0x2] sm:$0xff]
        %v1365 = vld [vmem:[%s255 + $0x12] sm:$0xff]
        %v1366 = vld [vmem:[%s255 + $0x22] sm:$0xff]
        %v1367 = vld [vmem:[%s255 + $0x32] sm:$0xff]
        %v1368 = vld [vmem:[%s255 + $0x42] sm:$0xff]
        %v1369 = vld [vmem:[%s255 + $0x52] sm:$0xff]
        %v1370 = vld [vmem:[%s255 + $0x62] sm:$0xff]
        %v1371 = vld [vmem:[%s255 + $0x72] sm:$0xff]
        %1380 = vrot.lane.b32.xlu0 %v1364, 8
        %v1381 = vpop.permute.xlu0 %1380
        %1382 = vrot.lane.b32.xlu0 %v1365, 8
        %v1383 = vpop.permute.xlu0 %1382
        %1384 = vrot.lane.b32.xlu0 %v1366, 8
        %v1385 = vpop.permute.xlu0 %1384
        %1386 = vrot.lane.b32.xlu0 %v1367, 8
        %v1387 = vpop.permute.xlu0 %1386
        %1388 = vrot.lane.b32.xlu0 %v1368, 8
        %v1389 = vpop.permute.xlu0 %1388
        %1390 = vrot.lane.b32.xlu0 %v1369, 8
        %v1391 = vpop.permute.xlu0 %1390
        %1392 = vrot.lane.b32.xlu0 %v1370, 8
        %v1393 = vpop.permute.xlu0 %1392
        %1394 = vrot.lane.b32.xlu0 %v1371, 8
        %v1395 = vpop.permute.xlu0 %1394
        %1404 = vst.msk [vmem:[#allocation2] sm:$0xff] %vm246, %v1381
        %1405 = vst.msk [vmem:[#allocation2 + $0x8] sm:$0xff] %vm246, %v1383
        %1406 = vst.msk [vmem:[#allocation2 + $0x10] sm:$0xff] %vm246, %v1385
        %1407 = vst.msk [vmem:[#allocation2 + $0x18] sm:$0xff] %vm246, %v1387
        %1408 = vst.msk [vmem:[#allocation2 + $0x20] sm:$0xff] %vm246, %v1389
        %1409 = vst.msk [vmem:[#allocation2 + $0x28] sm:$0xff] %vm246, %v1391
        %1410 = vst.msk [vmem:[#allocation2 + $0x30] sm:$0xff] %vm246, %v1393
        %1411 = vst.msk [vmem:[#allocation2 + $0x38] sm:$0xff] %vm246, %v1395
        %v1412 = vld [vmem:[%s1016 + $0x1] sm:$0xff]
        %v1413 = vld [vmem:[%s1016 + $0x11] sm:$0xff]
        %v1414 = vld [vmem:[%s1016 + $0x21] sm:$0xff]
        %v1415 = vld [vmem:[%s1016 + $0x31] sm:$0xff]
        %v1416 = vld [vmem:[%s1016 + $0x41] sm:$0xff]
        %v1417 = vld [vmem:[%s1016 + $0x51] sm:$0xff]
        %v1418 = vld [vmem:[%s1016 + $0x61] sm:$0xff]
        %v1419 = vld [vmem:[%s1016 + $0x71] sm:$0xff]
        %1428 = vrot.lane.b32.xlu0 %v1412, 16
        %v1429 = vpop.permute.xlu0 %1428
        %1430 = vrot.lane.b32.xlu0 %v1413, 16
        %v1431 = vpop.permute.xlu0 %1430
        %1432 = vrot.lane.b32.xlu0 %v1414, 16
        %v1433 = vpop.permute.xlu0 %1432
        %1434 = vrot.lane.b32.xlu0 %v1415, 16
        %v1435 = vpop.permute.xlu0 %1434
        %1436 = vrot.lane.b32.xlu0 %v1416, 16
        %v1437 = vpop.permute.xlu0 %1436
        %1438 = vrot.lane.b32.xlu0 %v1417, 16
        %v1439 = vpop.permute.xlu0 %1438
        %1440 = vrot.lane.b32.xlu0 %v1418, 16
        %v1441 = vpop.permute.xlu0 %1440
        %1442 = vrot.lane.b32.xlu0 %v1419, 16
        %v1443 = vpop.permute.xlu0 %1442
        %1452 = vst.msk [vmem:[#allocation2] sm:$0xff] %vm296, %v1429
        %1453 = vst.msk [vmem:[#allocation2 + $0x8] sm:$0xff] %vm296, %v1431
        %1454 = vst.msk [vmem:[#allocation2 + $0x10] sm:$0xff] %vm296, %v1433
        %1455 = vst.msk [vmem:[#allocation2 + $0x18] sm:$0xff] %vm296, %v1435
        %1456 = vst.msk [vmem:[#allocation2 + $0x20] sm:$0xff] %vm296, %v1437
        %1457 = vst.msk [vmem:[#allocation2 + $0x28] sm:$0xff] %vm296, %v1439
        %1458 = vst.msk [vmem:[#allocation2 + $0x30] sm:$0xff] %vm296, %v1441
        %1459 = vst.msk [vmem:[#allocation2 + $0x38] sm:$0xff] %vm296, %v1443
        %v1460 = vld [vmem:[%s1016 + $0x2] sm:$0xff]
        %v1461 = vld [vmem:[%s1016 + $0x12] sm:$0xff]
        %v1462 = vld [vmem:[%s1016 + $0x22] sm:$0xff]
        %v1463 = vld [vmem:[%s1016 + $0x32] sm:$0xff]
        %v1464 = vld [vmem:[%s1016 + $0x42] sm:$0xff]
        %v1465 = vld [vmem:[%s1016 + $0x52] sm:$0xff]
        %v1466 = vld [vmem:[%s1016 + $0x62] sm:$0xff]
        %v1467 = vld [vmem:[%s1016 + $0x72] sm:$0xff]
        %1476 = vrot.lane.b32.xlu0 %v1460, 24
        %v1477 = vpop.permute.xlu0 %1476
        %1478 = vrot.lane.b32.xlu0 %v1461, 24
        %v1479 = vpop.permute.xlu0 %1478
        %1480 = vrot.lane.b32.xlu0 %v1462, 24
        %v1481 = vpop.permute.xlu0 %1480
        %1482 = vrot.lane.b32.xlu0 %v1463, 24
        %v1483 = vpop.permute.xlu0 %1482
        %1484 = vrot.lane.b32.xlu0 %v1464, 24
        %v1485 = vpop.permute.xlu0 %1484
        %1486 = vrot.lane.b32.xlu0 %v1465, 24
        %v1487 = vpop.permute.xlu0 %1486
        %1488 = vrot.lane.b32.xlu0 %v1466, 24
        %v1489 = vpop.permute.xlu0 %1488
        %1490 = vrot.lane.b32.xlu0 %v1467, 24
        %v1491 = vpop.permute.xlu0 %1490
        %1500 = vst.msk [vmem:[#allocation2] sm:$0xff] %vm345, %v1477
        %1501 = vst.msk [vmem:[#allocation2 + $0x8] sm:$0xff] %vm345, %v1479
        %1502 = vst.msk [vmem:[#allocation2 + $0x10] sm:$0xff] %vm345, %v1481
        %1503 = vst.msk [vmem:[#allocation2 + $0x18] sm:$0xff] %vm345, %v1483
        %1504 = vst.msk [vmem:[#allocation2 + $0x20] sm:$0xff] %vm345, %v1485
        %1505 = vst.msk [vmem:[#allocation2 + $0x28] sm:$0xff] %vm345, %v1487
        %1506 = vst.msk [vmem:[#allocation2 + $0x30] sm:$0xff] %vm345, %v1489
        %1507 = vst.msk [vmem:[#allocation2 + $0x38] sm:$0xff] %vm345, %v1491
        %v1508 = vld [vmem:[#allocation2] sm:$0xff]
        %v1509 = vld [vmem:[#allocation2 + $0x8] sm:$0xff]
        %v1510 = vld [vmem:[#allocation2 + $0x10] sm:$0xff]
        %v1511 = vld [vmem:[#allocation2 + $0x18] sm:$0xff]
        %v1512 = vld [vmem:[#allocation2 + $0x20] sm:$0xff]
        %v1513 = vld [vmem:[#allocation2 + $0x28] sm:$0xff]
        %v1514 = vld [vmem:[#allocation2 + $0x30] sm:$0xff]
        %v1515 = vld [vmem:[#allocation2 + $0x38] sm:$0xff]
        %s1516 = scalar_lea.vmem %s1, 96
        %v1517 = vld [vmem:[%s1516] sm:$0xff]
        %v1518 = vld [vmem:[%s1516 + $0x8] sm:$0xff]
        %v1519 = vld [vmem:[%s1516 + $0x10] sm:$0xff]
        %v1520 = vld [vmem:[%s1516 + $0x18] sm:$0xff]
        %v1522 = vsel %vm366, %v1508, 0
        %v1525 = vsel %vm366, %v1509, 0
        %v1528 = vsel %vm366, %v1510, 0
        %v1531 = vsel %vm366, %v1511, 0
        %v1534 = vsel %vm366, %v1512, 0
        %v1537 = vsel %vm366, %v1513, 0
        %v1540 = vsel %vm366, %v1514, 0
        %v1543 = vsel %vm366, %v1515, 0
        %1545 = vmatprep.subr.mxu0 0.0
        %1546 = vmatpush1.msra.mxu0 %v1517
        %1547 = vmatprep.subr.mxu0 0.0
        %1548 = vmatpush1.msra.mxu0 %v1518
        %1549 = vmatprep.subr.mxu0 0.0
        %1550 = vmatpush1.msra.mxu0 %v1519
        %1551 = vmatprep.subr.mxu0 0.0
        %1552 = vmatpush1.msra.mxu0 %v1520
        %1553 = vmatprep.subr.mxu0 0.0
        %1554 = vmatpush1.msra.mxu0 0.0
        %1555 = vmatprep.subr.mxu0 0.0
        %1556 = vmatpush1.msra.mxu0 0.0
        %1557 = vmatprep.subr.mxu0 0.0
        %1558 = vmatpush1.msra.mxu0 0.0
        %1559 = vmatprep.subr.mxu0 0.0
        %1560 = vmatpush1.msra.mxu0 0.0
        %1561 = vmatprep.subr.mxu0 0.0
        %1562 = vmatpush1.msra.mxu0 0.0
        %1563 = vmatprep.subr.mxu0 0.0
        %1564 = vmatpush1.msra.mxu0 0.0
        %1565 = vmatprep.subr.mxu0 0.0
        %1566 = vmatpush1.msra.mxu0 0.0
        %1567 = vmatprep.subr.mxu0 0.0
        %1568 = vmatpush1.msra.mxu0 0.0
        %1569 = vmatprep.subr.mxu0 0.0
        %1570 = vmatpush1.msra.mxu0 0.0
        %1571 = vmatprep.subr.mxu0 0.0
        %1572 = vmatpush1.msra.mxu0 0.0
        %1573 = vmatprep.subr.mxu0 0.0
        %1574 = vmatpush1.msra.mxu0 0.0
        %1575 = vmatprep.subr.mxu0 0.0
        %1576 = vmatpush1.msra.mxu0 0.0
        %1577 = vmatprep.subr.mxu0 0.0
        %1578 = vmatpush1.msra.mxu0 0.0
        %1579 = vmatprep.subr.mxu0 0.0
        %1580 = vmatpush1.msra.mxu0 0.0
        %1581 = vmatprep.subr.mxu0 0.0
        %1582 = vmatpush1.msra.mxu0 0.0
        %1583 = vmatprep.subr.mxu0 0.0
        %1584 = vmatpush1.msra.mxu0 0.0
        %1585 = vmatprep.subr.mxu0 0.0
        %1586 = vmatpush1.msra.mxu0 0.0
        %1587 = vmatprep.subr.mxu0 0.0
        %1588 = vmatpush1.msra.mxu0 0.0
        %1589 = vmatprep.subr.mxu0 0.0
        %1590 = vmatpush1.msra.mxu0 0.0
        %1591 = vmatprep.subr.mxu0 0.0
        %1592 = vmatpush1.msra.mxu0 0.0
        %1593 = vmatprep.subr.mxu0 0.0
        %1594 = vmatpush1.msra.mxu0 0.0
        %1595 = vmatprep.subr.mxu0 0.0
        %1596 = vmatpush1.msra.mxu0 0.0
        %1597 = vmatprep.subr.mxu0 0.0
        %1598 = vmatpush1.msra.mxu0 0.0
        %1599 = vmatprep.subr.mxu0 0.0
        %1600 = vmatpush1.msra.mxu0 0.0
        %1601 = vmatprep.subr.mxu0 0.0
        %1602 = vmatpush1.msra.mxu0 0.0
        %1603 = vmatprep.subr.mxu0 0.0
        %1604 = vmatpush1.msra.mxu0 0.0
        %1605 = vmatprep.subr.mxu0 0.0
        %1606 = vmatpush1.msra.mxu0 0.0
        %1607 = vmatprep.subr.mxu0 0.0
        %1608 = vmatpush1.msra.mxu0 0.0
        %1609 = vmatprep.mubr.f32.mxu0 0.0
        %1610 = vmatmul.mubr.f32.gmra.mrb[0].mxu0 %v1522
        %v1611 = vpop.f32.mrb[0].mxu0
        %v1612 = vadd.f32 0.0, %v1611
        %v1613 = vpop.f32.mrb[0].mxu0
        %1614 = vmatprep.mubr.f32.mxu0 0.0
        %1615 = vmatmul.mubr.f32.gmra.mrb[0].mxu0 %v1525
        %v1616 = vpop.f32.mrb[0].mxu0
        %v1617 = vadd.f32 0.0, %v1616
        %v1618 = vpop.f32.mrb[0].mxu0
        %1619 = vmatprep.mubr.f32.mxu0 0.0
        %1620 = vmatmul.mubr.f32.gmra.mrb[0].mxu0 %v1528
        %v1621 = vpop.f32.mrb[0].mxu0
        %v1622 = vadd.f32 0.0, %v1621
        %v1623 = vpop.f32.mrb[0].mxu0
        %1624 = vmatprep.mubr.f32.mxu0 0.0
        %1625 = vmatmul.mubr.f32.gmra.mrb[0].mxu0 %v1531
        %v1626 = vpop.f32.mrb[0].mxu0
        %v1627 = vadd.f32 0.0, %v1626
        %v1628 = vpop.f32.mrb[0].mxu0
        %1629 = vmatprep.mubr.f32.mxu0 0.0
        %1630 = vmatmul.mubr.f32.gmra.mrb[0].mxu0 %v1534
        %v1631 = vpop.f32.mrb[0].mxu0
        %v1632 = vadd.f32 0.0, %v1631
        %v1633 = vpop.f32.mrb[0].mxu0
        %1634 = vmatprep.mubr.f32.mxu0 0.0
        %1635 = vmatmul.mubr.f32.gmra.mrb[0].mxu0 %v1537
        %v1636 = vpop.f32.mrb[0].mxu0
        %v1637 = vadd.f32 0.0, %v1636
        %v1638 = vpop.f32.mrb[0].mxu0
        %1639 = vmatprep.mubr.f32.mxu0 0.0
        %1640 = vmatmul.mubr.f32.gmra.mrb[0].mxu0 %v1540
        %v1641 = vpop.f32.mrb[0].mxu0
        %v1642 = vadd.f32 0.0, %v1641
        %v1643 = vpop.f32.mrb[0].mxu0
        %1644 = vmatprep.mubr.f32.mxu0 0.0
        %1645 = vmatmul.mubr.f32.gmra.mrb[0].mxu0 %v1543
        %v1646 = vpop.f32.mrb[0].mxu0
        %v1647 = vadd.f32 0.0, %v1646
        %v1648 = vpop.f32.mrb[0].mxu0
        %1649 = vdwg.mxu0
        %1658 = vrot.lane.b32.xlu0 %v1612, 12
        %v1659 = vpop.permute.xlu0 %1658
        %1660 = vrot.lane.b32.xlu0 %v1617, 12
        %v1661 = vpop.permute.xlu0 %1660
        %1662 = vrot.lane.b32.xlu0 %v1622, 12
        %v1663 = vpop.permute.xlu0 %1662
        %1664 = vrot.lane.b32.xlu0 %v1627, 12
        %v1665 = vpop.permute.xlu0 %1664
        %1666 = vrot.lane.b32.xlu0 %v1632, 12
        %v1667 = vpop.permute.xlu0 %1666
        %1668 = vrot.lane.b32.xlu0 %v1637, 12
        %v1669 = vpop.permute.xlu0 %1668
        %1670 = vrot.lane.b32.xlu0 %v1642, 12
        %v1671 = vpop.permute.xlu0 %1670
        %1672 = vrot.lane.b32.xlu0 %v1647, 12
        %v1673 = vpop.permute.xlu0 %1672
        %vm1682 = vcmask 130144
        %1683 = vst.msk [vmem:[#allocation3] sm:$0xff] %vm1682, %v1659
        %1684 = vst.msk [vmem:[#allocation3 + $0x8] sm:$0xff] %vm1682, %v1661
        %1685 = vst.msk [vmem:[#allocation3 + $0x10] sm:$0xff] %vm1682, %v1663
        %1686 = vst.msk [vmem:[#allocation3 + $0x18] sm:$0xff] %vm1682, %v1665
        %1687 = vst.msk [vmem:[#allocation3 + $0x20] sm:$0xff] %vm1682, %v1667
        %1688 = vst.msk [vmem:[#allocation3 + $0x28] sm:$0xff] %vm1682, %v1669
        %1689 = vst.msk [vmem:[#allocation3 + $0x30] sm:$0xff] %vm1682, %v1671
        %1690 = vst.msk [vmem:[#allocation3 + $0x38] sm:$0xff] %vm1682, %v1673
        %v1691 = vsel %vm496, %v1612, 0.0
        %v1692 = vsel %vm496, %v1617, 0.0
        %v1693 = vadd.f32 %v1691, %v1692
        %v1694 = vsel %vm496, %v1622, 0.0
        %v1695 = vadd.f32 %v1693, %v1694
        %v1696 = vsel %vm496, %v1627, 0.0
        %v1697 = vadd.f32 %v1695, %v1696
        %v1698 = vsel %vm496, %v1632, 0.0
        %v1699 = vadd.f32 %v1697, %v1698
        %v1700 = vsel %vm496, %v1637, 0.0
        %v1701 = vadd.f32 %v1699, %v1700
        %v1702 = vsel %vm496, %v1642, 0.0
        %v1703 = vadd.f32 %v1701, %v1702
        %v1704 = vsel %vm496, %v1647, 0.0
        %v1705 = vadd.f32 %v1703, %v1704
        %v1706 = vrot.slane %v1705, 4
        %v1707 = vadd.f32 %v1705, %v1706
        %v1708 = vrot.slane %v1707, 2
        %v1709 = vadd.f32 %v1707, %v1708
        %v1710 = vrot.slane %v1709, 1
        %v1711 = vadd.f32 %v1709, %v1710
        %v1712 = vadd.f32 %v1317, %v1711
        %v1713 = vmul.f32 %v1612, %v1612
        %v1714 = vmul.f32 %v1617, %v1617
        %v1715 = vmul.f32 %v1622, %v1622
        %v1716 = vmul.f32 %v1627, %v1627
        %v1717 = vmul.f32 %v1632, %v1632
        %v1718 = vmul.f32 %v1637, %v1637
        %v1719 = vmul.f32 %v1642, %v1642
        %v1720 = vmul.f32 %v1647, %v1647
        %v1721 = vsel %vm496, %v1713, 0.0
        %v1722 = vsel %vm496, %v1714, 0.0
        %v1723 = vadd.f32 %v1721, %v1722
        %v1724 = vsel %vm496, %v1715, 0.0
        %v1725 = vadd.f32 %v1723, %v1724
        %v1726 = vsel %vm496, %v1716, 0.0
        %v1727 = vadd.f32 %v1725, %v1726
        %v1728 = vsel %vm496, %v1717, 0.0
        %v1729 = vadd.f32 %v1727, %v1728
        %v1730 = vsel %vm496, %v1718, 0.0
        %v1731 = vadd.f32 %v1729, %v1730
        %v1732 = vsel %vm496, %v1719, 0.0
        %v1733 = vadd.f32 %v1731, %v1732
        %v1734 = vsel %vm496, %v1720, 0.0
        %v1735 = vadd.f32 %v1733, %v1734
        %v1736 = vrot.slane %v1735, 4
        %v1737 = vadd.f32 %v1735, %v1736
        %v1738 = vrot.slane %v1737, 2
        %v1739 = vadd.f32 %v1737, %v1738
        %v1740 = vrot.slane %v1739, 1
        %v1741 = vadd.f32 %v1739, %v1740
        %v1742 = vadd.f32 %v1347, %v1741
        %v1743 = vmul.f32 %v1712, 0.00390625
        %v1744 = vmul.f32 %v1742, 0.00390625
        %v1745 = vmul.f32 %v1743, %v1743
        %v1746 = vsub.f32 %v1744, %v1745
        %v1747 = vadd.f32 %v1746, 1e-05
        %v1748 = vrsqrt.pop %v1747
        %v1749 = vld [vmem:[#allocation3] sm:$0xff]
        %v1750 = vld [vmem:[#allocation3 + $0x8] sm:$0xff]
        %v1751 = vld [vmem:[#allocation3 + $0x10] sm:$0xff]
        %v1752 = vld [vmem:[#allocation3 + $0x18] sm:$0xff]
        %v1753 = vld [vmem:[#allocation3 + $0x20] sm:$0xff]
        %v1754 = vld [vmem:[#allocation3 + $0x28] sm:$0xff]
        %v1755 = vld [vmem:[#allocation3 + $0x30] sm:$0xff]
        %v1756 = vld [vmem:[#allocation3 + $0x38] sm:$0xff]
        %v1757 = vsub.f32 %v1749, %v1743
        %v1758 = vsub.f32 %v1750, %v1743
        %v1759 = vsub.f32 %v1751, %v1743
        %v1760 = vsub.f32 %v1752, %v1743
        %v1761 = vsub.f32 %v1753, %v1743
        %v1762 = vsub.f32 %v1754, %v1743
        %v1763 = vsub.f32 %v1755, %v1743
        %v1764 = vsub.f32 %v1756, %v1743
        %v1765 = vmul.f32 %v1757, %v1748
        %v1766 = vmul.f32 %v1758, %v1748
        %v1767 = vmul.f32 %v1759, %v1748
        %v1768 = vmul.f32 %v1760, %v1748
        %v1769 = vmul.f32 %v1761, %v1748
        %v1770 = vmul.f32 %v1762, %v1748
        %v1771 = vmul.f32 %v1763, %v1748
        %v1772 = vmul.f32 %v1764, %v1748
        %vm1773 = vcmp.ge.f32.partialorder %v1765, 0.0
        %vm1774 = vcmp.ge.f32.partialorder %v1766, 0.0
        %vm1775 = vcmp.ge.f32.partialorder %v1767, 0.0
        %vm1776 = vcmp.ge.f32.partialorder %v1768, 0.0
        %vm1777 = vcmp.ge.f32.partialorder %v1769, 0.0
        %vm1778 = vcmp.ge.f32.partialorder %v1770, 0.0
        %vm1779 = vcmp.ge.f32.partialorder %v1771, 0.0
        %vm1780 = vcmp.ge.f32.partialorder %v1772, 0.0
        %v1781 = vmul.f32 %v1765, 0.01
        %v1782 = vmul.f32 %v1766, 0.01
        %v1783 = vmul.f32 %v1767, 0.01
        %v1784 = vmul.f32 %v1768, 0.01
        %v1785 = vmul.f32 %v1769, 0.01
        %v1786 = vmul.f32 %v1770, 0.01
        %v1787 = vmul.f32 %v1771, 0.01
        %v1788 = vmul.f32 %v1772, 0.01
        %v1789 = vsel %vm1773, %v1765, %v1781
        %v1790 = vsel %vm1774, %v1766, %v1782
        %v1791 = vsel %vm1775, %v1767, %v1783
        %v1792 = vsel %vm1776, %v1768, %v1784
        %v1793 = vsel %vm1777, %v1769, %v1785
        %v1794 = vsel %vm1778, %v1770, %v1786
        %v1795 = vsel %vm1779, %v1771, %v1787
        %v1796 = vsel %vm1780, %v1772, %v1788
        %1797 = vst.msk [vmem:[%s178] sm:$0xff] %vm496, %v1789
        %1798 = vst.msk [vmem:[%s178 + $0x10] sm:$0xff] %vm496, %v1790
        %1799 = vst.msk [vmem:[%s178 + $0x20] sm:$0xff] %vm496, %v1791
        %1800 = vst.msk [vmem:[%s178 + $0x30] sm:$0xff] %vm496, %v1792
        %1801 = vst.msk [vmem:[%s178 + $0x40] sm:$0xff] %vm496, %v1793
        %1802 = vst.msk [vmem:[%s178 + $0x50] sm:$0xff] %vm496, %v1794
        %1803 = vst.msk [vmem:[%s178 + $0x60] sm:$0xff] %vm496, %v1795
        %1804 = vst.msk [vmem:[%s178 + $0x70] sm:$0xff] %vm496, %v1796
        %v1805 = vld [vmem:[#allocation3] sm:$0xff]
        %v1806 = vld [vmem:[#allocation3 + $0x8] sm:$0xff]
        %v1807 = vld [vmem:[#allocation3 + $0x10] sm:$0xff]
        %v1808 = vld [vmem:[#allocation3 + $0x18] sm:$0xff]
        %v1809 = vld [vmem:[#allocation3 + $0x20] sm:$0xff]
        %v1810 = vld [vmem:[#allocation3 + $0x28] sm:$0xff]
        %v1811 = vld [vmem:[#allocation3 + $0x30] sm:$0xff]
        %v1812 = vld [vmem:[#allocation3 + $0x38] sm:$0xff]
        %1814 = vrot.lane.b32.xlu0 %v1743, 4
        %v1815 = vpop.permute.xlu0 %1814
        %v1817 = vsub.f32 %v1805, %v1815
        %v1818 = vsub.f32 %v1806, %v1815
        %v1819 = vsub.f32 %v1807, %v1815
        %v1820 = vsub.f32 %v1808, %v1815
        %v1821 = vsub.f32 %v1809, %v1815
        %v1822 = vsub.f32 %v1810, %v1815
        %v1823 = vsub.f32 %v1811, %v1815
        %v1824 = vsub.f32 %v1812, %v1815
        %1826 = vrot.lane.b32.xlu0 %v1748, 4
        %v1827 = vpop.permute.xlu0 %1826
        %v1829 = vmul.f32 %v1817, %v1827
        %v1830 = vmul.f32 %v1818, %v1827
        %v1831 = vmul.f32 %v1819, %v1827
        %v1832 = vmul.f32 %v1820, %v1827
        %v1833 = vmul.f32 %v1821, %v1827
        %v1834 = vmul.f32 %v1822, %v1827
        %v1835 = vmul.f32 %v1823, %v1827
        %v1836 = vmul.f32 %v1824, %v1827
        %vm1837 = vcmp.ge.f32.partialorder %v1829, 0.0
        %vm1838 = vcmp.ge.f32.partialorder %v1830, 0.0
        %vm1839 = vcmp.ge.f32.partialorder %v1831, 0.0
        %vm1840 = vcmp.ge.f32.partialorder %v1832, 0.0
        %vm1841 = vcmp.ge.f32.partialorder %v1833, 0.0
        %vm1842 = vcmp.ge.f32.partialorder %v1834, 0.0
        %vm1843 = vcmp.ge.f32.partialorder %v1835, 0.0
        %vm1844 = vcmp.ge.f32.partialorder %v1836, 0.0
        %v1845 = vmul.f32 %v1829, 0.01
        %v1846 = vmul.f32 %v1830, 0.01
        %v1847 = vmul.f32 %v1831, 0.01
        %v1848 = vmul.f32 %v1832, 0.01
        %v1849 = vmul.f32 %v1833, 0.01
        %v1850 = vmul.f32 %v1834, 0.01
        %v1851 = vmul.f32 %v1835, 0.01
        %v1852 = vmul.f32 %v1836, 0.01
        %v1853 = vsel %vm1837, %v1829, %v1845
        %v1854 = vsel %vm1838, %v1830, %v1846
        %v1855 = vsel %vm1839, %v1831, %v1847
        %v1856 = vsel %vm1840, %v1832, %v1848
        %v1857 = vsel %vm1841, %v1833, %v1849
        %v1858 = vsel %vm1842, %v1834, %v1850
        %v1859 = vsel %vm1843, %v1835, %v1851
        %v1860 = vsel %vm1844, %v1836, %v1852
        %1869 = vrot.lane.b32.xlu0 %v1853, 4
        %v1870 = vpop.permute.xlu0 %1869
        %1871 = vrot.lane.b32.xlu0 %v1854, 4
        %v1872 = vpop.permute.xlu0 %1871
        %1873 = vrot.lane.b32.xlu0 %v1855, 4
        %v1874 = vpop.permute.xlu0 %1873
        %1875 = vrot.lane.b32.xlu0 %v1856, 4
        %v1876 = vpop.permute.xlu0 %1875
        %1877 = vrot.lane.b32.xlu0 %v1857, 4
        %v1878 = vpop.permute.xlu0 %1877
        %1879 = vrot.lane.b32.xlu0 %v1858, 4
        %v1880 = vpop.permute.xlu0 %1879
        %1881 = vrot.lane.b32.xlu0 %v1859, 4
        %v1882 = vpop.permute.xlu0 %1881
        %1883 = vrot.lane.b32.xlu0 %v1860, 4
        %v1884 = vpop.permute.xlu0 %1883
        %1893 = vst.msk [vmem:[%s178] sm:$0xff] %vm1287, %v1870
        %1894 = vst.msk [vmem:[%s178 + $0x10] sm:$0xff] %vm1287, %v1872
        %1895 = vst.msk [vmem:[%s178 + $0x20] sm:$0xff] %vm1287, %v1874
        %1896 = vst.msk [vmem:[%s178 + $0x30] sm:$0xff] %vm1287, %v1876
        %1897 = vst.msk [vmem:[%s178 + $0x40] sm:$0xff] %vm1287, %v1878
        %1898 = vst.msk [vmem:[%s178 + $0x50] sm:$0xff] %vm1287, %v1880
        %1899 = vst.msk [vmem:[%s178 + $0x60] sm:$0xff] %vm1287, %v1882
        %1900 = vst.msk [vmem:[%s178 + $0x70] sm:$0xff] %vm1287, %v1884
        %v1901 = vld [vmem:[#allocation3] sm:$0xff]
        %v1902 = vld [vmem:[#allocation3 + $0x8] sm:$0xff]
        %v1903 = vld [vmem:[#allocation3 + $0x10] sm:$0xff]
        %v1904 = vld [vmem:[#allocation3 + $0x18] sm:$0xff]
        %v1905 = vld [vmem:[#allocation3 + $0x20] sm:$0xff]
        %v1906 = vld [vmem:[#allocation3 + $0x28] sm:$0xff]
        %v1907 = vld [vmem:[#allocation3 + $0x30] sm:$0xff]
        %v1908 = vld [vmem:[#allocation3 + $0x38] sm:$0xff]
        %1909 = vrot.lane.b32.xlu0 %v1743, 8
        %v1910 = vpop.permute.xlu0 %1909
        %v1912 = vsub.f32 %v1901, %v1910
        %v1913 = vsub.f32 %v1902, %v1910
        %v1914 = vsub.f32 %v1903, %v1910
        %v1915 = vsub.f32 %v1904, %v1910
        %v1916 = vsub.f32 %v1905, %v1910
        %v1917 = vsub.f32 %v1906, %v1910
        %v1918 = vsub.f32 %v1907, %v1910
        %v1919 = vsub.f32 %v1908, %v1910
        %1920 = vrot.lane.b32.xlu0 %v1748, 8
        %v1921 = vpop.permute.xlu0 %1920
        %v1923 = vmul.f32 %v1912, %v1921
        %v1924 = vmul.f32 %v1913, %v1921
        %v1925 = vmul.f32 %v1914, %v1921
        %v1926 = vmul.f32 %v1915, %v1921
        %v1927 = vmul.f32 %v1916, %v1921
        %v1928 = vmul.f32 %v1917, %v1921
        %v1929 = vmul.f32 %v1918, %v1921
        %v1930 = vmul.f32 %v1919, %v1921
        %vm1931 = vcmp.ge.f32.partialorder %v1923, 0.0
        %vm1932 = vcmp.ge.f32.partialorder %v1924, 0.0
        %vm1933 = vcmp.ge.f32.partialorder %v1925, 0.0
        %vm1934 = vcmp.ge.f32.partialorder %v1926, 0.0
        %vm1935 = vcmp.ge.f32.partialorder %v1927, 0.0
        %vm1936 = vcmp.ge.f32.partialorder %v1928, 0.0
        %vm1937 = vcmp.ge.f32.partialorder %v1929, 0.0
        %vm1938 = vcmp.ge.f32.partialorder %v1930, 0.0
        %v1939 = vmul.f32 %v1923, 0.01
        %v1940 = vmul.f32 %v1924, 0.01
        %v1941 = vmul.f32 %v1925, 0.01
        %v1942 = vmul.f32 %v1926, 0.01
        %v1943 = vmul.f32 %v1927, 0.01
        %v1944 = vmul.f32 %v1928, 0.01
        %v1945 = vmul.f32 %v1929, 0.01
        %v1946 = vmul.f32 %v1930, 0.01
        %v1947 = vsel %vm1931, %v1923, %v1939
        %v1948 = vsel %vm1932, %v1924, %v1940
        %v1949 = vsel %vm1933, %v1925, %v1941
        %v1950 = vsel %vm1934, %v1926, %v1942
        %v1951 = vsel %vm1935, %v1927, %v1943
        %v1952 = vsel %vm1936, %v1928, %v1944
        %v1953 = vsel %vm1937, %v1929, %v1945
        %v1954 = vsel %vm1938, %v1930, %v1946
        %1963 = vrot.lane.b32.xlu0 %v1947, 120
        %v1964 = vpop.permute.xlu0 %1963
        %1965 = vrot.lane.b32.xlu0 %v1948, 120
        %v1966 = vpop.permute.xlu0 %1965
        %1967 = vrot.lane.b32.xlu0 %v1949, 120
        %v1968 = vpop.permute.xlu0 %1967
        %1969 = vrot.lane.b32.xlu0 %v1950, 120
        %v1970 = vpop.permute.xlu0 %1969
        %1971 = vrot.lane.b32.xlu0 %v1951, 120
        %v1972 = vpop.permute.xlu0 %1971
        %1973 = vrot.lane.b32.xlu0 %v1952, 120
        %v1974 = vpop.permute.xlu0 %1973
        %1975 = vrot.lane.b32.xlu0 %v1953, 120
        %v1976 = vpop.permute.xlu0 %1975
        %1977 = vrot.lane.b32.xlu0 %v1954, 120
        %v1978 = vpop.permute.xlu0 %1977
        %s1987 = scalar_lea.vmem %s178, 8 [#allocation4]
        %1988 = vst.msk [vmem:[%s1987] sm:$0xff] %vm496, %v1964
        %1989 = vst.msk [vmem:[%s1987 + $0x10] sm:$0xff] %vm496, %v1966
        %1990 = vst.msk [vmem:[%s1987 + $0x20] sm:$0xff] %vm496, %v1968
        %1991 = vst.msk [vmem:[%s1987 + $0x30] sm:$0xff] %vm496, %v1970
        %1992 = vst.msk [vmem:[%s1987 + $0x40] sm:$0xff] %vm496, %v1972
        %1993 = vst.msk [vmem:[%s1987 + $0x50] sm:$0xff] %vm496, %v1974
        %1994 = vst.msk [vmem:[%s1987 + $0x60] sm:$0xff] %vm496, %v1976
        %1995 = vst.msk [vmem:[%s1987 + $0x70] sm:$0xff] %vm496, %v1978
        %v1996 = vld [vmem:[#allocation3] sm:$0xff]
        %v1997 = vld [vmem:[#allocation3 + $0x8] sm:$0xff]
        %v1998 = vld [vmem:[#allocation3 + $0x10] sm:$0xff]
        %v1999 = vld [vmem:[#allocation3 + $0x18] sm:$0xff]
        %v2000 = vld [vmem:[#allocation3 + $0x20] sm:$0xff]
        %v2001 = vld [vmem:[#allocation3 + $0x28] sm:$0xff]
        %v2002 = vld [vmem:[#allocation3 + $0x30] sm:$0xff]
        %v2003 = vld [vmem:[#allocation3 + $0x38] sm:$0xff]
        %2004 = vrot.lane.b32.xlu0 %v1743, 12
        %v2005 = vpop.permute.xlu0 %2004
        %v2007 = vsub.f32 %v1996, %v2005
        %v2008 = vsub.f32 %v1997, %v2005
        %v2009 = vsub.f32 %v1998, %v2005
        %v2010 = vsub.f32 %v1999, %v2005
        %v2011 = vsub.f32 %v2000, %v2005
        %v2012 = vsub.f32 %v2001, %v2005
        %v2013 = vsub.f32 %v2002, %v2005
        %v2014 = vsub.f32 %v2003, %v2005
        %2015 = vrot.lane.b32.xlu0 %v1748, 12
        %v2016 = vpop.permute.xlu0 %2015
        %v2018 = vmul.f32 %v2007, %v2016
        %v2019 = vmul.f32 %v2008, %v2016
        %v2020 = vmul.f32 %v2009, %v2016
        %v2021 = vmul.f32 %v2010, %v2016
        %v2022 = vmul.f32 %v2011, %v2016
        %v2023 = vmul.f32 %v2012, %v2016
        %v2024 = vmul.f32 %v2013, %v2016
        %v2025 = vmul.f32 %v2014, %v2016
        %vm2026 = vcmp.ge.f32.partialorder %v2018, 0.0
        %vm2027 = vcmp.ge.f32.partialorder %v2019, 0.0
        %vm2028 = vcmp.ge.f32.partialorder %v2020, 0.0
        %vm2029 = vcmp.ge.f32.partialorder %v2021, 0.0
        %vm2030 = vcmp.ge.f32.partialorder %v2022, 0.0
        %vm2031 = vcmp.ge.f32.partialorder %v2023, 0.0
        %vm2032 = vcmp.ge.f32.partialorder %v2024, 0.0
        %vm2033 = vcmp.ge.f32.partialorder %v2025, 0.0
        %v2034 = vmul.f32 %v2018, 0.01
        %v2035 = vmul.f32 %v2019, 0.01
        %v2036 = vmul.f32 %v2020, 0.01
        %v2037 = vmul.f32 %v2021, 0.01
        %v2038 = vmul.f32 %v2022, 0.01
        %v2039 = vmul.f32 %v2023, 0.01
        %v2040 = vmul.f32 %v2024, 0.01
        %v2041 = vmul.f32 %v2025, 0.01
        %v2042 = vsel %vm2026, %v2018, %v2034
        %v2043 = vsel %vm2027, %v2019, %v2035
        %v2044 = vsel %vm2028, %v2020, %v2036
        %v2045 = vsel %vm2029, %v2021, %v2037
        %v2046 = vsel %vm2030, %v2022, %v2038
        %v2047 = vsel %vm2031, %v2023, %v2039
        %v2048 = vsel %vm2032, %v2024, %v2040
        %v2049 = vsel %vm2033, %v2025, %v2041
        %2058 = vrot.lane.b32.xlu0 %v2042, 124
        %v2059 = vpop.permute.xlu0 %2058
        %2060 = vrot.lane.b32.xlu0 %v2043, 124
        %v2061 = vpop.permute.xlu0 %2060
        %2062 = vrot.lane.b32.xlu0 %v2044, 124
        %v2063 = vpop.permute.xlu0 %2062
        %2064 = vrot.lane.b32.xlu0 %v2045, 124
        %v2065 = vpop.permute.xlu0 %2064
        %2066 = vrot.lane.b32.xlu0 %v2046, 124
        %v2067 = vpop.permute.xlu0 %2066
        %2068 = vrot.lane.b32.xlu0 %v2047, 124
        %v2069 = vpop.permute.xlu0 %2068
        %2070 = vrot.lane.b32.xlu0 %v2048, 124
        %v2071 = vpop.permute.xlu0 %2070
        %2072 = vrot.lane.b32.xlu0 %v2049, 124
        %v2073 = vpop.permute.xlu0 %2072
        %2082 = vst.msk [vmem:[%s1987] sm:$0xff] %vm1287, %v2059
        %2083 = vst.msk [vmem:[%s1987 + $0x10] sm:$0xff] %vm1287, %v2061
        %2084 = vst.msk [vmem:[%s1987 + $0x20] sm:$0xff] %vm1287, %v2063
        %2085 = vst.msk [vmem:[%s1987 + $0x30] sm:$0xff] %vm1287, %v2065
        %2086 = vst.msk [vmem:[%s1987 + $0x40] sm:$0xff] %vm1287, %v2067
        %2087 = vst.msk [vmem:[%s1987 + $0x50] sm:$0xff] %vm1287, %v2069
        %2088 = vst.msk [vmem:[%s1987 + $0x60] sm:$0xff] %vm1287, %v2071
        %2089 = vst.msk [vmem:[%s1987 + $0x70] sm:$0xff] %vm1287, %v2073
        %v2090 = vld [vmem:[%s188] sm:$0xff]
        %v2091 = vld [vmem:[%s188 + $0x8] sm:$0xff]
        %v2092 = vld [vmem:[%s188 + $0x10] sm:$0xff]
        %v2093 = vld [vmem:[%s188 + $0x18] sm:$0xff]
        %v2094 = vld [vmem:[%s188 + $0x20] sm:$0xff]
        %v2095 = vld [vmem:[%s188 + $0x28] sm:$0xff]
        %v2096 = vld [vmem:[%s188 + $0x30] sm:$0xff]
        %v2097 = vld [vmem:[%s188 + $0x38] sm:$0xff]
        %v2098 = vld [vmem:[%s188 + $0x40] sm:$0xff]
        %v2099 = vld [vmem:[%s188 + $0x48] sm:$0xff]
        %v2100 = vld [vmem:[%s188 + $0x50] sm:$0xff]
        %v2101 = vld [vmem:[%s188 + $0x58] sm:$0xff]
        %v2102 = vld [vmem:[%s188 + $0x60] sm:$0xff]
        %v2103 = vld [vmem:[%s188 + $0x68] sm:$0xff]
        %v2104 = vld [vmem:[%s188 + $0x70] sm:$0xff]
        %v2105 = vld [vmem:[%s188 + $0x78] sm:$0xff]
        %2122 = vrot.lane.b32.xlu0 %v2090, 4
        %v2123 = vpop.permute.xlu0 %2122
        %2124 = vrot.lane.b32.xlu0 %v2091, 4
        %v2125 = vpop.permute.xlu0 %2124
        %2126 = vrot.lane.b32.xlu0 %v2092, 4
        %v2127 = vpop.permute.xlu0 %2126
        %2128 = vrot.lane.b32.xlu0 %v2093, 4
        %v2129 = vpop.permute.xlu0 %2128
        %2130 = vrot.lane.b32.xlu0 %v2094, 4
        %v2131 = vpop.permute.xlu0 %2130
        %2132 = vrot.lane.b32.xlu0 %v2095, 4
        %v2133 = vpop.permute.xlu0 %2132
        %2134 = vrot.lane.b32.xlu0 %v2096, 4
        %v2135 = vpop.permute.xlu0 %2134
        %2136 = vrot.lane.b32.xlu0 %v2097, 4
        %v2137 = vpop.permute.xlu0 %2136
        %2138 = vrot.lane.b32.xlu0 %v2098, 4
        %v2139 = vpop.permute.xlu0 %2138
        %2140 = vrot.lane.b32.xlu0 %v2099, 4
        %v2141 = vpop.permute.xlu0 %2140
        %2142 = vrot.lane.b32.xlu0 %v2100, 4
        %v2143 = vpop.permute.xlu0 %2142
        %2144 = vrot.lane.b32.xlu0 %v2101, 4
        %v2145 = vpop.permute.xlu0 %2144
        %2146 = vrot.lane.b32.xlu0 %v2102, 4
        %v2147 = vpop.permute.xlu0 %2146
        %2148 = vrot.lane.b32.xlu0 %v2103, 4
        %v2149 = vpop.permute.xlu0 %2148
        %2150 = vrot.lane.b32.xlu0 %v2104, 4
        %v2151 = vpop.permute.xlu0 %2150
        %2152 = vrot.lane.b32.xlu0 %v2105, 4
        %v2153 = vpop.permute.xlu0 %2152
        %2170 = vst.msk [vmem:[%s178] sm:$0xff] %vm891, %v2123
        %2171 = vst.msk [vmem:[%s178 + $0x8] sm:$0xff] %vm891, %v2125
        %2172 = vst.msk [vmem:[%s178 + $0x10] sm:$0xff] %vm891, %v2127
        %2173 = vst.msk [vmem:[%s178 + $0x18] sm:$0xff] %vm891, %v2129
        %2174 = vst.msk [vmem:[%s178 + $0x20] sm:$0xff] %vm891, %v2131
        %2175 = vst.msk [vmem:[%s178 + $0x28] sm:$0xff] %vm891, %v2133
        %2176 = vst.msk [vmem:[%s178 + $0x30] sm:$0xff] %vm891, %v2135
        %2177 = vst.msk [vmem:[%s178 + $0x38] sm:$0xff] %vm891, %v2137
        %2178 = vst.msk [vmem:[%s178 + $0x40] sm:$0xff] %vm891, %v2139
        %2179 = vst.msk [vmem:[%s178 + $0x48] sm:$0xff] %vm891, %v2141
        %2180 = vst.msk [vmem:[%s178 + $0x50] sm:$0xff] %vm891, %v2143
        %2181 = vst.msk [vmem:[%s178 + $0x58] sm:$0xff] %vm891, %v2145
        %2182 = vst.msk [vmem:[%s178 + $0x60] sm:$0xff] %vm891, %v2147
        %2183 = vst.msk [vmem:[%s178 + $0x68] sm:$0xff] %vm891, %v2149
        %2184 = vst.msk [vmem:[%s178 + $0x70] sm:$0xff] %vm891, %v2151
        %2185 = vst.msk [vmem:[%s178 + $0x78] sm:$0xff] %vm891, %v2153
        %v2186 = vld [vmem:[%s188] sm:$0xff]
        %v2187 = vld [vmem:[%s188 + $0x8] sm:$0xff]
        %v2188 = vld [vmem:[%s188 + $0x10] sm:$0xff]
        %v2189 = vld [vmem:[%s188 + $0x18] sm:$0xff]
        %v2190 = vld [vmem:[%s188 + $0x20] sm:$0xff]
        %v2191 = vld [vmem:[%s188 + $0x28] sm:$0xff]
        %v2192 = vld [vmem:[%s188 + $0x30] sm:$0xff]
        %v2193 = vld [vmem:[%s188 + $0x38] sm:$0xff]
        %v2194 = vld [vmem:[%s188 + $0x40] sm:$0xff]
        %v2195 = vld [vmem:[%s188 + $0x48] sm:$0xff]
        %v2196 = vld [vmem:[%s188 + $0x50] sm:$0xff]
        %v2197 = vld [vmem:[%s188 + $0x58] sm:$0xff]
        %v2198 = vld [vmem:[%s188 + $0x60] sm:$0xff]
        %v2199 = vld [vmem:[%s188 + $0x68] sm:$0xff]
        %v2200 = vld [vmem:[%s188 + $0x70] sm:$0xff]
        %v2201 = vld [vmem:[%s188 + $0x78] sm:$0xff]
        %2218 = vrot.lane.b32.xlu0 %v2186, 8
        %v2219 = vpop.permute.xlu0 %2218
        %2220 = vrot.lane.b32.xlu0 %v2187, 8
        %v2221 = vpop.permute.xlu0 %2220
        %2222 = vrot.lane.b32.xlu0 %v2188, 8
        %v2223 = vpop.permute.xlu0 %2222
        %2224 = vrot.lane.b32.xlu0 %v2189, 8
        %v2225 = vpop.permute.xlu0 %2224
        %2226 = vrot.lane.b32.xlu0 %v2190, 8
        %v2227 = vpop.permute.xlu0 %2226
        %2228 = vrot.lane.b32.xlu0 %v2191, 8
        %v2229 = vpop.permute.xlu0 %2228
        %2230 = vrot.lane.b32.xlu0 %v2192, 8
        %v2231 = vpop.permute.xlu0 %2230
        %2232 = vrot.lane.b32.xlu0 %v2193, 8
        %v2233 = vpop.permute.xlu0 %2232
        %2234 = vrot.lane.b32.xlu0 %v2194, 8
        %v2235 = vpop.permute.xlu0 %2234
        %2236 = vrot.lane.b32.xlu0 %v2195, 8
        %v2237 = vpop.permute.xlu0 %2236
        %2238 = vrot.lane.b32.xlu0 %v2196, 8
        %v2239 = vpop.permute.xlu0 %2238
        %2240 = vrot.lane.b32.xlu0 %v2197, 8
        %v2241 = vpop.permute.xlu0 %2240
        %2242 = vrot.lane.b32.xlu0 %v2198, 8
        %v2243 = vpop.permute.xlu0 %2242
        %2244 = vrot.lane.b32.xlu0 %v2199, 8
        %v2245 = vpop.permute.xlu0 %2244
        %2246 = vrot.lane.b32.xlu0 %v2200, 8
        %v2247 = vpop.permute.xlu0 %2246
        %2248 = vrot.lane.b32.xlu0 %v2201, 8
        %v2249 = vpop.permute.xlu0 %2248
        %2266 = vst.msk [vmem:[%s178] sm:$0xff] %vm1682, %v2219
        %2267 = vst.msk [vmem:[%s178 + $0x8] sm:$0xff] %vm1682, %v2221
        %2268 = vst.msk [vmem:[%s178 + $0x10] sm:$0xff] %vm1682, %v2223
        %2269 = vst.msk [vmem:[%s178 + $0x18] sm:$0xff] %vm1682, %v2225
        %2270 = vst.msk [vmem:[%s178 + $0x20] sm:$0xff] %vm1682, %v2227
        %2271 = vst.msk [vmem:[%s178 + $0x28] sm:$0xff] %vm1682, %v2229
        %2272 = vst.msk [vmem:[%s178 + $0x30] sm:$0xff] %vm1682, %v2231
        %2273 = vst.msk [vmem:[%s178 + $0x38] sm:$0xff] %vm1682, %v2233
        %2274 = vst.msk [vmem:[%s178 + $0x40] sm:$0xff] %vm1682, %v2235
        %2275 = vst.msk [vmem:[%s178 + $0x48] sm:$0xff] %vm1682, %v2237
        %2276 = vst.msk [vmem:[%s178 + $0x50] sm:$0xff] %vm1682, %v2239
        %2277 = vst.msk [vmem:[%s178 + $0x58] sm:$0xff] %vm1682, %v2241
        %2278 = vst.msk [vmem:[%s178 + $0x60] sm:$0xff] %vm1682, %v2243
        %2279 = vst.msk [vmem:[%s178 + $0x68] sm:$0xff] %vm1682, %v2245
        %2280 = vst.msk [vmem:[%s178 + $0x70] sm:$0xff] %vm1682, %v2247
        %2281 = vst.msk [vmem:[%s178 + $0x78] sm:$0xff] %vm1682, %v2249
        %s2282 = sand.u32 %s98, 1
        %s2283 = scalar_lea.sflag [#allocation5], %s2282
        %s2284 = sand.u32 %s98, 1
        %s2285 = smul.addr %s2284, 128
        %s2286 = scalar_lea.vmem [#allocation4], %s2285
        // Predicated region
        $region33: #{tpu_custom_call.1} parent=31 // pred_check
          %p2287 = pneg %p108
        $region34: #{tpu_custom_call.1} parent=31 // pred_check_branch
          %2289 = sbr.rel (%p2287) target = $region36
        $region35: #{tpu_custom_call.1} parent=31 // pred_region
          %s2291 = ssub.s32 2048, 2048
          %2292 = vsyncadd %s2283, %s2291
          %s2293 = smul.addr %s17, 16
          %s2294 = smul.addr %s2293, 128
          %s2295 = scalar_lea.hbm %s3, %s2294
          %s2296 = sshll.u32 %s2286, 4
          %s2297 = int_to_ptr.vmem [resolvable:$true] %s2296
          %2302 = dma.vmem_to_hbm [thread:$0]  %s2297, 2048, %s2295, %s2283, 128, 128, 8
        $region36: #{tpu_custom_call.1} parent=31 // pred_fallthru
          _
      $region32: #{tpu_custom_call.1} parent=5 // pred_fallthru
        _
      %p2303 = scmp.le.s32.totalorder 2, %s12
      // Predicated region
      $region37: #{tpu_custom_call.1} parent=5 // pred_check
        %p2304 = pneg %p2303
      $region38: #{tpu_custom_call.1} parent=5 // pred_check_branch
        %2306 = sbr.rel (%p2304) target = $region40
      $region39: #{tpu_custom_call.1} parent=5 // pred_region
        %s2307 = ssub.s32 %s12, 2
        // Predicated region
        $region41: #{tpu_custom_call.1} parent=39 // pred_check
          %p2308 = pneg %p114
        $region42: #{tpu_custom_call.1} parent=39 // pred_check_branch
          %2310 = sbr.rel (%p2308) target = $region44
        $region43: #{tpu_custom_call.1} parent=39 // pred_region
          %s2311 = sand.u32 %s99, 1
          %s2312 = scalar_lea.sflag [#allocation5], %s2311
          %s2313 = sand.u32 %s99, 1
          %s2314 = smul.addr %s2313, 128
          %s2315 = scalar_lea.vmem [#allocation4], %s2314
          %2316 = dma.done %s2312, 2048
        $region44: #{tpu_custom_call.1} parent=39 // pred_fallthru
          _
      $region40: #{tpu_custom_call.1} parent=5 // pred_fallthru
        _
    $region6: #{tpu_custom_call.1} parent=1 // loop_footer
      %s16 = sadd.s32 1, %s12
    $region7: #{tpu_custom_call.1} parent=1 // loop_footer_branch
      %11 = sbr.rel target = $region3
    $region8: #{tpu_custom_call.1} parent=1 // loop_exit
      _
    %2317 = vsyncpa [#allocation5], 1
    %s2318 = scalar_lea.sflag [#allocation5], 1
    %2319 = vsyncpa %s2318, 1

</llo_original>
